<compile_context>
chip_gen: v5e
topology: v5e:2x2
jax: 0.10.0
libtpu: 0.0.40
codegen_flags: <defaults>
</compile_context>

<pallas_src>
import functools

import jax
import jax.numpy as jnp
from jax.experimental import pallas as pl
from jax.experimental.pallas import tpu as pltpu


# ----------------------------- Pallas kernel -------------------------------


def _dcgru_cell_kernel(x_ref, h_ref, sup_ref,
                       wr_ref, wu_ref, wc_ref,
                       br_ref, bu_ref, bc_ref,
                       out_ref, *,
                       num_supports, max_diffusion_step, mxu_dtype):
    f32 = jnp.float32
    S = num_supports
    K = max_diffusion_step
    Bb, N, D = x_ref.shape              # batch block, nodes, input channels
    U = h_ref.shape[2]                  # hidden units
    M = S * K + 1                       # number of diffusion matrices

    x_blk = x_ref[...].astype(f32)      # (Bb, N, D)
    h_blk = h_ref[...].astype(f32)      # (Bb, N, U)
    sup = sup_ref[...]                  # (S, N, N), already compute_dtype

    def to_diffusion_layout(t3):
        # (Bb, N, ch) -> (N, Bb*ch): nodes on sublanes, batch-major channel
        # packing on lanes, so one adjacency matmul covers the whole block.
        return jnp.concatenate([t3[b] for b in range(Bb)], axis=1)

    def diffuse(y, ch):
        """Diffusion/Chebyshev terms of y.

        y: (N, Bb*ch) -> (Bb*N, M*ch), lane index = m*ch + c, row = b*N + n.
        Reproduces the original PyTorch recurrence exactly, including the
        x0/x1 carry-over across supports (a quirk of the reference code).
        Each step is a single (N, N) @ (N, Bb*ch) MXU matmul; accumulation and
        the Chebyshev-style 2*Ax1 - x0 recurrence stay in f32.
        """
        terms = [y]
        x0 = y
        if K > 0:
            for s in range(S):
                adj = sup[s].astype(mxu_dtype)
                x1 = jnp.dot(adj, x0.astype(mxu_dtype),
                             preferred_element_type=f32)
                terms.append(x1)
                for _ in range(2, K + 1):
                    x2 = 2.0 * jnp.dot(adj, x1.astype(mxu_dtype),
                                       preferred_element_type=f32) - x0
                    terms.append(x2)
                    x1, x0 = x2, x1
        # Regroup to matmul row layout via static lane slices + concats only
        # (no risky reshapes/transposes inside the kernel).
        rows = []
        for b in range(Bb):
            rows.append(jnp.concatenate(
                [t[:, b * ch:(b + 1) * ch] for t in terms], axis=1))
        return jnp.concatenate(rows, axis=0)          # (Bb*N, M*ch)

    x_nb = to_diffusion_layout(x_blk)                 # (N, Bb*D)
    h_nb = to_diffusion_layout(h_blk)                 # (N, Bb*U)
    h_rows = h_blk.reshape(Bb * N, U)                 # (Bb*N, U)

    # x-side diffusion is shared by the r/u gates and the candidate gate
    # (linearity of the diffusion over the [x, h] channel concat).
    x_big = diffuse(x_nb, D)                          # (Bb*N, M*D)
    h_big = diffuse(h_nb, U)                          # (Bb*N, M*U)
    # Lane-concat -> ONE large-K matmul per gate (K = M*(D+U)).
    xh_big = jnp.concatenate([x_big, h_big], axis=1).astype(mxu_dtype)

    def gate(lhs, w_ref_, b_ref_):
        return (jnp.dot(lhs, w_ref_[...].astype(mxu_dtype),
                        preferred_element_type=f32)
                + b_ref_[...].astype(f32))

    # r and u use separate weight/bias columns -> no lane slice at offset U.
    r = jax.nn.sigmoid(gate(xh_big, wr_ref, br_ref))             # (Bb*N, U)
    u = jax.nn.sigmoid(gate(xh_big, wu_ref, bu_ref))             # (Bb*N, U)

    rh_rows = r * h_rows                                         # (Bb*N, U)
    # Back to diffusion layout for the candidate graph convolution.
    rh_nb = jnp.concatenate(
        [rh_rows[b * N:(b + 1) * N, :] for b in range(Bb)], axis=1)  # (N, Bb*U)
    rh_big = diffuse(rh_nb, U)                                   # (Bb*N, M*U)
    xrh_big = jnp.concatenate([x_big, rh_big], axis=1).astype(mxu_dtype)

    c = jnp.tanh(gate(xrh_big, wc_ref, bc_ref))                  # (Bb*N, U)

    new_state = u * h_rows + (1.0 - u) * c                       # (Bb*N, U)
    out_ref[...] = new_state.reshape(Bb, N, U)


# ------------------------ parameter prep (hoisted) --------------------------


def prepare_dcgru_params(supports, w_ru, b_ru, w_c, b_c, *, input_dim,
                         num_units, max_diffusion_step,
                         compute_dtype=jnp.float32):
    """One-time regrouping of the torch gconv parameters (hoist out of scan).

    torch weight row index is c*M + m with channels [inputs | state]; we split
    into x-side (M*D, O) and h-side (M*U, O) weights with row index m*ch + c,
    stack them into one fused (M*(D+U), O) operand per gate, and split the r/u
    output columns so the kernel never lane-slices at U.
    """
    D = input_dim
    U = num_units
    C = D + U
    S = supports.shape[0]
    M = S * max_diffusion_step + 1

    def regroup(w):
        O = w.shape[1]
        w3 = w.reshape(C, M, O)                                   # [c, m, o]
        wx = jnp.transpose(w3[:D], (1, 0, 2)).reshape(M * D, O)   # row m*D+d
        wh = jnp.transpose(w3[D:], (1, 0, 2)).reshape(M * U, O)   # row m*U+j
        return jnp.concatenate([wx, wh], axis=0)                  # (M*(D+U), O)

    w_ru_f = regroup(w_ru)        # (M*(D+U), 2U)
    w_c_f = regroup(w_c)          # (M*(D+U), U)
    cd = compute_dtype
    return dict(
        supports=supports.astype(cd),
        wr=w_ru_f[:, :U].astype(cd),
        wu=w_ru_f[:, U:].astype(cd),
        wc=w_c_f.astype(cd),
        br=b_ru[:U].reshape(1, U).astype(jnp.float32),
        bu=b_ru[U:].reshape(1, U).astype(jnp.float32),
        bc=b_c.reshape(1, U).astype(jnp.float32),
    )


# ------------------------------- wrapper ------------------------------------


def dcgru_cell_pallas(inputs, hx, params, *, num_nodes, num_units,
                      max_diffusion_step, batch_block=None,
                      compute_dtype=jnp.float32):
    """inputs: (B, N*D), hx: (B, N*U) -> new_state (B, N*U)."""
    B = inputs.shape[0]
    N = num_nodes
    U = num_units
    D = inputs.shape[1] // N
    sup = params["supports"]
    S = sup.shape[0]
    M = S * max_diffusion_step + 1
    C = D + U
    Bb = B if batch_block is None else batch_block
    assert B % Bb == 0

    # Keep x/h in f32; the kernel casts MXU operands to compute_dtype itself.
    x3 = inputs.reshape(B, N, D).astype(jnp.float32)
    h3 = hx.reshape(B, N, U).astype(jnp.float32)

    kernel = functools.partial(
        _dcgru_cell_kernel,
        num_supports=S,
        max_diffusion_step=max_diffusion_step,
        mxu_dtype=compute_dtype,
    )

    blk3 = lambda b: (b, 0, 0)     # batch-blocked arrays
    full3 = lambda b: (0, 0, 0)    # broadcast 3-D arrays (resident across grid)
    full2 = lambda b: (0, 0)       # broadcast 2-D arrays

    out = pl.pallas_call(
        kernel,
        out_shape=jax.ShapeDtypeStruct((B, N, U), jnp.float32),
        grid=(B // Bb,),
        in_specs=[
            pl.BlockSpec((Bb, N, D), blk3),       # x
            pl.BlockSpec((Bb, N, U), blk3),       # h
            pl.BlockSpec((S, N, N), full3),       # supports
            pl.BlockSpec((M * C, U), full2),      # wr (fused x|h rows)
            pl.BlockSpec((M * C, U), full2),      # wu
            pl.BlockSpec((M * C, U), full2),      # wc
            pl.BlockSpec((1, U), full2),          # br
            pl.BlockSpec((1, U), full2),          # bu
            pl.BlockSpec((1, U), full2),          # bc
        ],
        out_specs=pl.BlockSpec((Bb, N, U), blk3),
        compiler_params=pltpu.CompilerParams(
            dimension_semantics=("parallel",),        # megacore / 2 TCs on v7x
            vmem_limit_bytes=48 * 1024 * 1024,        # below v7x 64 MiB VMEM
        ),
    )(x3, h3, sup,
      params["wr"], params["wu"], params["wc"],
      params["br"], params["bu"], params["bc"])
    return out.reshape(B, N * U)


# ------------------------ pure-JAX reference (torch mimic) ------------------


def _gconv_ref(inputs, state, supports, W, b, num_nodes, K):
    B = inputs.shape[0]
    N = num_nodes
    x = jnp.concatenate(
        [inputs.reshape(B, N, -1), state.reshape(B, N, -1)], axis=2)
    C = x.shape[2]
    x0 = jnp.transpose(x, (1, 2, 0)).reshape(N, C * B)
    mats = [x0]
    if K > 0:
        for s in range(supports.shape[0]):
            adj = supports[s]
            x1 = adj @ x0
            mats.append(x1)
            for _k in range(2, K + 1):
                x2 = 2.0 * (adj @ x1) - x0
                mats.append(x2)
                x1, x0 = x2, x1
    M = len(mats)
    xcat = jnp.stack(mats, axis=0).reshape(M, N, C, B)
    xcat = jnp.transpose(xcat, (3, 1, 2, 0)).reshape(B * N, C * M)
    out = xcat @ W + b
    return out.reshape(B, N * W.shape[1])


def dcgru_cell_ref(inputs, hx, supports, w_ru, b_ru, w_c, b_c, *,
                   num_nodes, num_units, max_diffusion_step):
    B = inputs.shape[0]
    N, U, K = num_nodes, num_units, max_diffusion_step
    value = jax.nn.sigmoid(
        _gconv_ref(inputs, hx, supports, w_ru, b_ru, N, K))
    value = value.reshape(B, N, 2 * U)
    r = value[..., :U].reshape(B, N * U)
    u = value[..., U:].reshape(B, N * U)
    c = jnp.tanh(_gconv_ref(inputs, r * hx, supports, w_c, b_c, N, K))
    return u * hx + (1.0 - u) * c


# --------------------------------- main -------------------------------------


if __name__ == "__main__":
    # Small, DCRNN-like configuration.
    B = 4                 # batch
    N = 16                # num_nodes
    D = 2                 # input feature dim per node
    U = 32                # num_units (hidden)
    K = 2                 # max_diffusion_step
    S = 2                 # number of supports (fwd / bwd random walk)
    C = D + U
    M = S * K + 1

    key = jax.random.PRNGKey(0)
    k_in, k_h, k_s0, k_s1, k_wru, k_wc = jax.random.split(key, 6)

    inputs = jax.random.normal(k_in, (B, N * D), dtype=jnp.float32)
    hx = 0.1 * jax.random.normal(k_h, (B, N * U), dtype=jnp.float32)

    # Deterministic row-normalized random-walk style supports.
    a0 = jax.random.uniform(k_s0, (N, N), dtype=jnp.float32)
    a1 = jax.random.uniform(k_s1, (N, N), dtype=jnp.float32)
    supports = jnp.stack([a0 / a0.sum(-1, keepdims=True),
                          a1 / a1.sum(-1, keepdims=True)], axis=0)

    # Parameters (xavier_normal_ for weights, constant bias_start for biases).
    def xavier_normal(k, shape):
        std = (2.0 / (shape[0] + shape[1])) ** 0.5
        return std * jax.random.normal(k, shape, dtype=jnp.float32)

    w_ru = xavier_normal(k_wru, (C * M, 2 * U))   # gconv weights for r,u gates
    b_ru = jnp.full((2 * U,), 1.0, dtype=jnp.float32)   # bias_start = 1.0
    w_c = xavier_normal(k_wc, (C * M, U))         # gconv weights for candidate
    b_c = jnp.zeros((U,), dtype=jnp.float32)      # bias_start = 0.0

    ref = dcgru_cell_ref(
        inputs, hx, supports, w_ru, b_ru, w_c, b_c,
        num_nodes=N, num_units=U, max_diffusion_step=K)
    ref = jax.block_until_ready(ref)

    # ---- f32 MXU path (exact check) ----
    params32 = prepare_dcgru_params(
        supports, w_ru, b_ru, w_c, b_c, input_dim=D, num_units=U,
        max_diffusion_step=K, compute_dtype=jnp.float32)
    out32 = dcgru_cell_pallas(
        inputs, hx, params32, num_nodes=N, num_units=U,
        max_diffusion_step=K, batch_block=2, compute_dtype=jnp.float32)
    out32 = jax.block_until_ready(out32)
    assert out32.shape == (B, N * U)
    assert jnp.allclose(out32, ref, rtol=1e-4, atol=1e-4), (
        float(jnp.max(jnp.abs(out32 - ref))))

    # ---- bf16 MXU-operand path (v6e/v7x oriented; f32 accumulate/elementwise) ----
    params16 = prepare_dcgru_params(
        supports, w_ru, b_ru, w_c, b_c, input_dim=D, num_units=U,
        max_diffusion_step=K, compute_dtype=jnp.bfloat16)
    out16 = dcgru_cell_pallas(
        inputs, hx, params16, num_nodes=N, num_units=U,
        max_diffusion_step=K, batch_block=2, compute_dtype=jnp.bfloat16)
    out16 = jax.block_until_ready(out16)
    assert out16.shape == (B, N * U)
    assert jnp.allclose(out16, ref, rtol=5e-2, atol=5e-2), (
        float(jnp.max(jnp.abs(out16 - ref))))

    print("KERNEL_OK")
</pallas_src>

<mosaic_0001>
module attributes {stable_mosaic.version = 11 : i64} {
  func.func @_dcgru_cell_kernel(%arg0: i32, %arg1: memref<2x16x2xf32, #tpu.memory_space<vmem>>, %arg2: memref<2x16x32xf32, #tpu.memory_space<vmem>>, %arg3: memref<2x16x16xf32, #tpu.memory_space<vmem>>, %arg4: memref<170x32xf32, #tpu.memory_space<vmem>>, %arg5: memref<170x32xf32, #tpu.memory_space<vmem>>, %arg6: memref<170x32xf32, #tpu.memory_space<vmem>>, %arg7: memref<1x32xf32, #tpu.memory_space<vmem>>, %arg8: memref<1x32xf32, #tpu.memory_space<vmem>>, %arg9: memref<1x32xf32, #tpu.memory_space<vmem>>, %arg10: memref<2x16x32xf32, #tpu.memory_space<vmem>>) attributes {dimension_semantics = [#tpu.dimension_semantics<parallel>], iteration_bounds = array<i64: 2>, scalar_prefetch = 0 : i64, scratch_operands = 0 : i64, tpu.core_type = #tpu.core_type<tc>, window_params = [{transform_indices = @transform_0, window_bounds = array<i64: 2, 16, 2>}, {transform_indices = @transform_1, window_bounds = array<i64: 2, 16, 32>}, {pipeline_mode = #tpu.pipeline_mode<synchronous>, transform_indices = @transform_2, window_bounds = array<i64: 2, 16, 16>}, {pipeline_mode = #tpu.pipeline_mode<synchronous>, transform_indices = @transform_3, window_bounds = array<i64: 170, 32>}, {pipeline_mode = #tpu.pipeline_mode<synchronous>, transform_indices = @transform_4, window_bounds = array<i64: 170, 32>}, {pipeline_mode = #tpu.pipeline_mode<synchronous>, transform_indices = @transform_5, window_bounds = array<i64: 170, 32>}, {pipeline_mode = #tpu.pipeline_mode<synchronous>, transform_indices = @transform_6, window_bounds = array<i64: 1, 32>}, {pipeline_mode = #tpu.pipeline_mode<synchronous>, transform_indices = @transform_7, window_bounds = array<i64: 1, 32>}, {pipeline_mode = #tpu.pipeline_mode<synchronous>, transform_indices = @transform_8, window_bounds = array<i64: 1, 32>}, {transform_indices = @transform_9, window_bounds = array<i64: 2, 16, 32>}]} {
    %c0 = arith.constant 0 : index
    %c0_0 = arith.constant 0 : index
    %c0_1 = arith.constant 0 : index
    %0 = vector.load %arg1[%c0, %c0_0, %c0_1] : memref<2x16x2xf32, #tpu.memory_space<vmem>>, vector<2x16x2xf32>
    %c0_2 = arith.constant 0 : index
    %c0_3 = arith.constant 0 : index
    %c0_4 = arith.constant 0 : index
    %1 = vector.load %arg2[%c0_2, %c0_3, %c0_4] : memref<2x16x32xf32, #tpu.memory_space<vmem>>, vector<2x16x32xf32>
    %c0_5 = arith.constant 0 : index
    %c0_6 = arith.constant 0 : index
    %c0_7 = arith.constant 0 : index
    %2 = vector.load %arg3[%c0_5, %c0_6, %c0_7] : memref<2x16x16xf32, #tpu.memory_space<vmem>>, vector<2x16x16xf32>
    %3 = vector.extract_strided_slice %0 {offsets = [0, 0, 0], sizes = [1, 16, 2], strides = [1, 1, 1]} : vector<2x16x2xf32> to vector<1x16x2xf32>
    %4 = vector.shape_cast %3 : vector<1x16x2xf32> to vector<16x2xf32>
    %5 = vector.extract_strided_slice %0 {offsets = [1, 0, 0], sizes = [1, 16, 2], strides = [1, 1, 1]} : vector<2x16x2xf32> to vector<1x16x2xf32>
    %6 = vector.shape_cast %5 : vector<1x16x2xf32> to vector<16x2xf32>
    %7 = tpu.concatenate %4, %6 in 1 : vector<16x2xf32>, vector<16x2xf32> -> vector<16x4xf32>
    %8 = vector.extract_strided_slice %1 {offsets = [0, 0, 0], sizes = [1, 16, 32], strides = [1, 1, 1]} : vector<2x16x32xf32> to vector<1x16x32xf32>
    %9 = vector.shape_cast %8 : vector<1x16x32xf32> to vector<16x32xf32>
    %10 = vector.extract_strided_slice %1 {offsets = [1, 0, 0], sizes = [1, 16, 32], strides = [1, 1, 1]} : vector<2x16x32xf32> to vector<1x16x32xf32>
    %11 = vector.shape_cast %10 : vector<1x16x32xf32> to vector<16x32xf32>
    %12 = tpu.concatenate %9, %11 in 1 : vector<16x32xf32>, vector<16x32xf32> -> vector<16x64xf32>
    %13 = vector.shape_cast %1 : vector<2x16x32xf32> to vector<32x32xf32>
    %14 = vector.extract_strided_slice %2 {offsets = [0, 0, 0], sizes = [1, 16, 16], strides = [1, 1, 1]} : vector<2x16x16xf32> to vector<1x16x16xf32>
    %15 = vector.shape_cast %14 : vector<1x16x16xf32> to vector<16x16xf32>
    %cst = arith.constant dense<0.000000e+00> : vector<16x4xf32>
    %16 = tpu.matmul %15, %7, %cst {dimension_numbers = #tpu.dot_dimension_numbers<[1], [0], [0], [1], [0, 0, 1, 1], [], []>} : vector<16x16xf32>, vector<16x4xf32>, vector<16x4xf32> -> vector<16x4xf32>
    %cst_8 = arith.constant dense<0.000000e+00> : vector<16x4xf32>
    %17 = tpu.matmul %15, %16, %cst_8 {dimension_numbers = #tpu.dot_dimension_numbers<[1], [0], [0], [1], [0, 0, 1, 1], [], []>} : vector<16x16xf32>, vector<16x4xf32>, vector<16x4xf32> -> vector<16x4xf32>
    %cst_9 = arith.constant 2.000000e+00 : f32
    %18 = vector.broadcast %cst_9 : f32 to vector<16x4xf32>
    %19 = arith.mulf %18, %17 : vector<16x4xf32>
    %20 = arith.subf %19, %7 : vector<16x4xf32>
    %21 = vector.extract_strided_slice %2 {offsets = [1, 0, 0], sizes = [1, 16, 16], strides = [1, 1, 1]} : vector<2x16x16xf32> to vector<1x16x16xf32>
    %22 = vector.shape_cast %21 : vector<1x16x16xf32> to vector<16x16xf32>
    %cst_10 = arith.constant dense<0.000000e+00> : vector<16x4xf32>
    %23 = tpu.matmul %22, %16, %cst_10 {dimension_numbers = #tpu.dot_dimension_numbers<[1], [0], [0], [1], [0, 0, 1, 1], [], []>} : vector<16x16xf32>, vector<16x4xf32>, vector<16x4xf32> -> vector<16x4xf32>
    %cst_11 = arith.constant dense<0.000000e+00> : vector<16x4xf32>
    %24 = tpu.matmul %22, %23, %cst_11 {dimension_numbers = #tpu.dot_dimension_numbers<[1], [0], [0], [1], [0, 0, 1, 1], [], []>} : vector<16x16xf32>, vector<16x4xf32>, vector<16x4xf32> -> vector<16x4xf32>
    %cst_12 = arith.constant 2.000000e+00 : f32
    %25 = vector.broadcast %cst_12 : f32 to vector<16x4xf32>
    %26 = arith.mulf %25, %24 : vector<16x4xf32>
    %27 = arith.subf %26, %16 : vector<16x4xf32>
    %28 = vector.extract_strided_slice %7 {offsets = [0, 0], sizes = [16, 2], strides = [1, 1]} : vector<16x4xf32> to vector<16x2xf32>
    %29 = vector.extract_strided_slice %16 {offsets = [0, 0], sizes = [16, 2], strides = [1, 1]} : vector<16x4xf32> to vector<16x2xf32>
    %30 = vector.extract_strided_slice %20 {offsets = [0, 0], sizes = [16, 2], strides = [1, 1]} : vector<16x4xf32> to vector<16x2xf32>
    %31 = vector.extract_strided_slice %23 {offsets = [0, 0], sizes = [16, 2], strides = [1, 1]} : vector<16x4xf32> to vector<16x2xf32>
    %32 = vector.extract_strided_slice %27 {offsets = [0, 0], sizes = [16, 2], strides = [1, 1]} : vector<16x4xf32> to vector<16x2xf32>
    %33 = tpu.concatenate %28, %29, %30, %31, %32 in 1 : vector<16x2xf32>, vector<16x2xf32>, vector<16x2xf32>, vector<16x2xf32>, vector<16x2xf32> -> vector<16x10xf32>
    %34 = vector.extract_strided_slice %7 {offsets = [0, 2], sizes = [16, 2], strides = [1, 1]} : vector<16x4xf32> to vector<16x2xf32>
    %35 = vector.extract_strided_slice %16 {offsets = [0, 2], sizes = [16, 2], strides = [1, 1]} : vector<16x4xf32> to vector<16x2xf32>
    %36 = vector.extract_strided_slice %20 {offsets = [0, 2], sizes = [16, 2], strides = [1, 1]} : vector<16x4xf32> to vector<16x2xf32>
    %37 = vector.extract_strided_slice %23 {offsets = [0, 2], sizes = [16, 2], strides = [1, 1]} : vector<16x4xf32> to vector<16x2xf32>
    %38 = vector.extract_strided_slice %27 {offsets = [0, 2], sizes = [16, 2], strides = [1, 1]} : vector<16x4xf32> to vector<16x2xf32>
    %39 = tpu.concatenate %34, %35, %36, %37, %38 in 1 : vector<16x2xf32>, vector<16x2xf32>, vector<16x2xf32>, vector<16x2xf32>, vector<16x2xf32> -> vector<16x10xf32>
    %40 = tpu.concatenate %33, %39 in 0 : vector<16x10xf32>, vector<16x10xf32> -> vector<32x10xf32>
    %41 = vector.extract_strided_slice %2 {offsets = [0, 0, 0], sizes = [1, 16, 16], strides = [1, 1, 1]} : vector<2x16x16xf32> to vector<1x16x16xf32>
    %42 = vector.shape_cast %41 : vector<1x16x16xf32> to vector<16x16xf32>
    %cst_13 = arith.constant dense<0.000000e+00> : vector<16x64xf32>
    %43 = tpu.matmul %42, %12, %cst_13 {dimension_numbers = #tpu.dot_dimension_numbers<[1], [0], [0], [1], [0, 0, 1, 1], [], []>} : vector<16x16xf32>, vector<16x64xf32>, vector<16x64xf32> -> vector<16x64xf32>
    %cst_14 = arith.constant dense<0.000000e+00> : vector<16x64xf32>
    %44 = tpu.matmul %42, %43, %cst_14 {dimension_numbers = #tpu.dot_dimension_numbers<[1], [0], [0], [1], [0, 0, 1, 1], [], []>} : vector<16x16xf32>, vector<16x64xf32>, vector<16x64xf32> -> vector<16x64xf32>
    %cst_15 = arith.constant 2.000000e+00 : f32
    %45 = vector.broadcast %cst_15 : f32 to vector<16x64xf32>
    %46 = arith.mulf %45, %44 : vector<16x64xf32>
    %47 = arith.subf %46, %12 : vector<16x64xf32>
    %48 = vector.extract_strided_slice %2 {offsets = [1, 0, 0], sizes = [1, 16, 16], strides = [1, 1, 1]} : vector<2x16x16xf32> to vector<1x16x16xf32>
    %49 = vector.shape_cast %48 : vector<1x16x16xf32> to vector<16x16xf32>
    %cst_16 = arith.constant dense<0.000000e+00> : vector<16x64xf32>
    %50 = tpu.matmul %49, %43, %cst_16 {dimension_numbers = #tpu.dot_dimension_numbers<[1], [0], [0], [1], [0, 0, 1, 1], [], []>} : vector<16x16xf32>, vector<16x64xf32>, vector<16x64xf32> -> vector<16x64xf32>
    %cst_17 = arith.constant dense<0.000000e+00> : vector<16x64xf32>
    %51 = tpu.matmul %49, %50, %cst_17 {dimension_numbers = #tpu.dot_dimension_numbers<[1], [0], [0], [1], [0, 0, 1, 1], [], []>} : vector<16x16xf32>, vector<16x64xf32>, vector<16x64xf32> -> vector<16x64xf32>
    %cst_18 = arith.constant 2.000000e+00 : f32
    %52 = vector.broadcast %cst_18 : f32 to vector<16x64xf32>
    %53 = arith.mulf %52, %51 : vector<16x64xf32>
    %54 = arith.subf %53, %43 : vector<16x64xf32>
    %55 = vector.extract_strided_slice %12 {offsets = [0, 0], sizes = [16, 32], strides = [1, 1]} : vector<16x64xf32> to vector<16x32xf32>
    %56 = vector.extract_strided_slice %43 {offsets = [0, 0], sizes = [16, 32], strides = [1, 1]} : vector<16x64xf32> to vector<16x32xf32>
    %57 = vector.extract_strided_slice %47 {offsets = [0, 0], sizes = [16, 32], strides = [1, 1]} : vector<16x64xf32> to vector<16x32xf32>
    %58 = vector.extract_strided_slice %50 {offsets = [0, 0], sizes = [16, 32], strides = [1, 1]} : vector<16x64xf32> to vector<16x32xf32>
    %59 = vector.extract_strided_slice %54 {offsets = [0, 0], sizes = [16, 32], strides = [1, 1]} : vector<16x64xf32> to vector<16x32xf32>
    %60 = tpu.concatenate %55, %56, %57, %58, %59 in 1 : vector<16x32xf32>, vector<16x32xf32>, vector<16x32xf32>, vector<16x32xf32>, vector<16x32xf32> -> vector<16x160xf32>
    %61 = vector.extract_strided_slice %12 {offsets = [0, 32], sizes = [16, 32], strides = [1, 1]} : vector<16x64xf32> to vector<16x32xf32>
    %62 = vector.extract_strided_slice %43 {offsets = [0, 32], sizes = [16, 32], strides = [1, 1]} : vector<16x64xf32> to vector<16x32xf32>
    %63 = vector.extract_strided_slice %47 {offsets = [0, 32], sizes = [16, 32], strides = [1, 1]} : vector<16x64xf32> to vector<16x32xf32>
    %64 = vector.extract_strided_slice %50 {offsets = [0, 32], sizes = [16, 32], strides = [1, 1]} : vector<16x64xf32> to vector<16x32xf32>
    %65 = vector.extract_strided_slice %54 {offsets = [0, 32], sizes = [16, 32], strides = [1, 1]} : vector<16x64xf32> to vector<16x32xf32>
    %66 = tpu.concatenate %61, %62, %63, %64, %65 in 1 : vector<16x32xf32>, vector<16x32xf32>, vector<16x32xf32>, vector<16x32xf32>, vector<16x32xf32> -> vector<16x160xf32>
    %67 = tpu.concatenate %60, %66 in 0 : vector<16x160xf32>, vector<16x160xf32> -> vector<32x160xf32>
    %68 = tpu.concatenate %40, %67 in 1 : vector<32x10xf32>, vector<32x160xf32> -> vector<32x170xf32>
    %c0_19 = arith.constant 0 : index
    %c0_20 = arith.constant 0 : index
    %69 = vector.load %arg4[%c0_19, %c0_20] : memref<170x32xf32, #tpu.memory_space<vmem>>, vector<170x32xf32>
    %cst_21 = arith.constant dense<0.000000e+00> : vector<32x32xf32>
    %70 = tpu.matmul %68, %69, %cst_21 {dimension_numbers = #tpu.dot_dimension_numbers<[1], [0], [0], [1], [0, 0, 1, 1], [], []>} : vector<32x170xf32>, vector<170x32xf32>, vector<32x32xf32> -> vector<32x32xf32>
    %c0_22 = arith.constant 0 : index
    %c0_23 = arith.constant 0 : index
    %71 = vector.load %arg7[%c0_22, %c0_23] : memref<1x32xf32, #tpu.memory_space<vmem>>, vector<1x32xf32>
    %72 = vector.broadcast %71 : vector<1x32xf32> to vector<32x32xf32>
    %73 = arith.addf %70, %72 : vector<32x32xf32>
    %74 = arith.negf %73 : vector<32x32xf32>
    %75 = math.exp %74 : vector<32x32xf32>
    %cst_24 = arith.constant 1.000000e+00 : f32
    %76 = vector.broadcast %cst_24 : f32 to vector<32x32xf32>
    %77 = arith.addf %76, %75 : vector<32x32xf32>
    %78 = arith.divf %76, %77 : vector<32x32xf32>
    %c0_25 = arith.constant 0 : index
    %c0_26 = arith.constant 0 : index
    %79 = vector.load %arg5[%c0_25, %c0_26] : memref<170x32xf32, #tpu.memory_space<vmem>>, vector<170x32xf32>
    %cst_27 = arith.constant dense<0.000000e+00> : vector<32x32xf32>
    %80 = tpu.matmul %68, %79, %cst_27 {dimension_numbers = #tpu.dot_dimension_numbers<[1], [0], [0], [1], [0, 0, 1, 1], [], []>} : vector<32x170xf32>, vector<170x32xf32>, vector<32x32xf32> -> vector<32x32xf32>
    %c0_28 = arith.constant 0 : index
    %c0_29 = arith.constant 0 : index
    %81 = vector.load %arg8[%c0_28, %c0_29] : memref<1x32xf32, #tpu.memory_space<vmem>>, vector<1x32xf32>
    %82 = vector.broadcast %81 : vector<1x32xf32> to vector<32x32xf32>
    %83 = arith.addf %80, %82 : vector<32x32xf32>
    %84 = arith.negf %83 : vector<32x32xf32>
    %85 = math.exp %84 : vector<32x32xf32>
    %cst_30 = arith.constant 1.000000e+00 : f32
    %86 = vector.broadcast %cst_30 : f32 to vector<32x32xf32>
    %87 = arith.addf %86, %85 : vector<32x32xf32>
    %88 = arith.divf %86, %87 : vector<32x32xf32>
    %89 = arith.mulf %78, %13 : vector<32x32xf32>
    %90 = vector.extract_strided_slice %89 {offsets = [0, 0], sizes = [16, 32], strides = [1, 1]} : vector<32x32xf32> to vector<16x32xf32>
    %91 = vector.extract_strided_slice %89 {offsets = [16, 0], sizes = [16, 32], strides = [1, 1]} : vector<32x32xf32> to vector<16x32xf32>
    %92 = tpu.concatenate %90, %91 in 1 : vector<16x32xf32>, vector<16x32xf32> -> vector<16x64xf32>
    %93 = vector.extract_strided_slice %2 {offsets = [0, 0, 0], sizes = [1, 16, 16], strides = [1, 1, 1]} : vector<2x16x16xf32> to vector<1x16x16xf32>
    %94 = vector.shape_cast %93 : vector<1x16x16xf32> to vector<16x16xf32>
    %cst_31 = arith.constant dense<0.000000e+00> : vector<16x64xf32>
    %95 = tpu.matmul %94, %92, %cst_31 {dimension_numbers = #tpu.dot_dimension_numbers<[1], [0], [0], [1], [0, 0, 1, 1], [], []>} : vector<16x16xf32>, vector<16x64xf32>, vector<16x64xf32> -> vector<16x64xf32>
    %cst_32 = arith.constant dense<0.000000e+00> : vector<16x64xf32>
    %96 = tpu.matmul %94, %95, %cst_32 {dimension_numbers = #tpu.dot_dimension_numbers<[1], [0], [0], [1], [0, 0, 1, 1], [], []>} : vector<16x16xf32>, vector<16x64xf32>, vector<16x64xf32> -> vector<16x64xf32>
    %cst_33 = arith.constant 2.000000e+00 : f32
    %97 = vector.broadcast %cst_33 : f32 to vector<16x64xf32>
    %98 = arith.mulf %97, %96 : vector<16x64xf32>
    %99 = arith.subf %98, %92 : vector<16x64xf32>
    %100 = vector.extract_strided_slice %2 {offsets = [1, 0, 0], sizes = [1, 16, 16], strides = [1, 1, 1]} : vector<2x16x16xf32> to vector<1x16x16xf32>
    %101 = vector.shape_cast %100 : vector<1x16x16xf32> to vector<16x16xf32>
    %cst_34 = arith.constant dense<0.000000e+00> : vector<16x64xf32>
    %102 = tpu.matmul %101, %95, %cst_34 {dimension_numbers = #tpu.dot_dimension_numbers<[1], [0], [0], [1], [0, 0, 1, 1], [], []>} : vector<16x16xf32>, vector<16x64xf32>, vector<16x64xf32> -> vector<16x64xf32>
    %cst_35 = arith.constant dense<0.000000e+00> : vector<16x64xf32>
    %103 = tpu.matmul %101, %102, %cst_35 {dimension_numbers = #tpu.dot_dimension_numbers<[1], [0], [0], [1], [0, 0, 1, 1], [], []>} : vector<16x16xf32>, vector<16x64xf32>, vector<16x64xf32> -> vector<16x64xf32>
    %cst_36 = arith.constant 2.000000e+00 : f32
    %104 = vector.broadcast %cst_36 : f32 to vector<16x64xf32>
    %105 = arith.mulf %104, %103 : vector<16x64xf32>
    %106 = arith.subf %105, %95 : vector<16x64xf32>
    %107 = vector.extract_strided_slice %92 {offsets = [0, 0], sizes = [16, 32], strides = [1, 1]} : vector<16x64xf32> to vector<16x32xf32>
    %108 = vector.extract_strided_slice %95 {offsets = [0, 0], sizes = [16, 32], strides = [1, 1]} : vector<16x64xf32> to vector<16x32xf32>
    %109 = vector.extract_strided_slice %99 {offsets = [0, 0], sizes = [16, 32], strides = [1, 1]} : vector<16x64xf32> to vector<16x32xf32>
    %110 = vector.extract_strided_slice %102 {offsets = [0, 0], sizes = [16, 32], strides = [1, 1]} : vector<16x64xf32> to vector<16x32xf32>
    %111 = vector.extract_strided_slice %106 {offsets = [0, 0], sizes = [16, 32], strides = [1, 1]} : vector<16x64xf32> to vector<16x32xf32>
    %112 = tpu.concatenate %107, %108, %109, %110, %111 in 1 : vector<16x32xf32>, vector<16x32xf32>, vector<16x32xf32>, vector<16x32xf32>, vector<16x32xf32> -> vector<16x160xf32>
    %113 = vector.extract_strided_slice %92 {offsets = [0, 32], sizes = [16, 32], strides = [1, 1]} : vector<16x64xf32> to vector<16x32xf32>
    %114 = vector.extract_strided_slice %95 {offsets = [0, 32], sizes = [16, 32], strides = [1, 1]} : vector<16x64xf32> to vector<16x32xf32>
    %115 = vector.extract_strided_slice %99 {offsets = [0, 32], sizes = [16, 32], strides = [1, 1]} : vector<16x64xf32> to vector<16x32xf32>
    %116 = vector.extract_strided_slice %102 {offsets = [0, 32], sizes = [16, 32], strides = [1, 1]} : vector<16x64xf32> to vector<16x32xf32>
    %117 = vector.extract_strided_slice %106 {offsets = [0, 32], sizes = [16, 32], strides = [1, 1]} : vector<16x64xf32> to vector<16x32xf32>
    %118 = tpu.concatenate %113, %114, %115, %116, %117 in 1 : vector<16x32xf32>, vector<16x32xf32>, vector<16x32xf32>, vector<16x32xf32>, vector<16x32xf32> -> vector<16x160xf32>
    %119 = tpu.concatenate %112, %118 in 0 : vector<16x160xf32>, vector<16x160xf32> -> vector<32x160xf32>
    %120 = tpu.concatenate %40, %119 in 1 : vector<32x10xf32>, vector<32x160xf32> -> vector<32x170xf32>
    %c0_37 = arith.constant 0 : index
    %c0_38 = arith.constant 0 : index
    %121 = vector.load %arg6[%c0_37, %c0_38] : memref<170x32xf32, #tpu.memory_space<vmem>>, vector<170x32xf32>
    %cst_39 = arith.constant dense<0.000000e+00> : vector<32x32xf32>
    %122 = tpu.matmul %120, %121, %cst_39 {dimension_numbers = #tpu.dot_dimension_numbers<[1], [0], [0], [1], [0, 0, 1, 1], [], []>} : vector<32x170xf32>, vector<170x32xf32>, vector<32x32xf32> -> vector<32x32xf32>
    %c0_40 = arith.constant 0 : index
    %c0_41 = arith.constant 0 : index
    %123 = vector.load %arg9[%c0_40, %c0_41] : memref<1x32xf32, #tpu.memory_space<vmem>>, vector<1x32xf32>
    %124 = vector.broadcast %123 : vector<1x32xf32> to vector<32x32xf32>
    %125 = arith.addf %122, %124 : vector<32x32xf32>
    %126 = math.tanh %125 : vector<32x32xf32>
    %127 = arith.mulf %88, %13 : vector<32x32xf32>
    %cst_42 = arith.constant 1.000000e+00 : f32
    %128 = vector.broadcast %cst_42 : f32 to vector<32x32xf32>
    %129 = arith.subf %128, %88 : vector<32x32xf32>
    %130 = arith.mulf %129, %126 : vector<32x32xf32>
    %131 = arith.addf %127, %130 : vector<32x32xf32>
    %132 = vector.shape_cast %131 : vector<32x32xf32> to vector<2x16x32xf32>
    %c0_43 = arith.constant 0 : index
    %c0_44 = arith.constant 0 : index
    %c0_45 = arith.constant 0 : index
    %133 = vector.load %arg10[%c0_43, %c0_44, %c0_45] : memref<2x16x32xf32, #tpu.memory_space<vmem>>, vector<2x16x32xf32>
    tpu.vector_store %arg10[%c0_43, %c0_44, %c0_45], %132 {strides = array<i32>} : memref<2x16x32xf32, #tpu.memory_space<vmem>>, vector<2x16x32xf32>,
    return
  }
  func.func @transform_0(%arg0: i32) -> (i32, i32, i32) {
    %c0_i32 = arith.constant 0 : i32
    %c0_i32_0 = arith.constant 0 : i32
    %c0_i32_1 = arith.constant 0 : i32
    return %arg0, %c0_i32, %c0_i32_0 : i32, i32, i32
  }
  func.func @transform_1(%arg0: i32) -> (i32, i32, i32) {
    %c0_i32 = arith.constant 0 : i32
    %c0_i32_0 = arith.constant 0 : i32
    %c0_i32_1 = arith.constant 0 : i32
    return %arg0, %c0_i32, %c0_i32_0 : i32, i32, i32
  }
  func.func @transform_2(%arg0: i32) -> (i32, i32, i32) {
    %c0_i32 = arith.constant 0 : i32
    %c0_i32_0 = arith.constant 0 : i32
    %c0_i32_1 = arith.constant 0 : i32
    %c0_i32_2 = arith.constant 0 : i32
    return %c0_i32, %c0_i32_0, %c0_i32_1 : i32, i32, i32
  }
  func.func @transform_3(%arg0: i32) -> (i32, i32) {
    %c0_i32 = arith.constant 0 : i32
    %c0_i32_0 = arith.constant 0 : i32
    %c0_i32_1 = arith.constant 0 : i32
    return %c0_i32, %c0_i32_0 : i32, i32
  }
  func.func @transform_4(%arg0: i32) -> (i32, i32) {
    %c0_i32 = arith.constant 0 : i32
    %c0_i32_0 = arith.constant 0 : i32
    %c0_i32_1 = arith.constant 0 : i32
    return %c0_i32, %c0_i32_0 : i32, i32
  }
  func.func @transform_5(%arg0: i32) -> (i32, i32) {
    %c0_i32 = arith.constant 0 : i32
    %c0_i32_0 = arith.constant 0 : i32
    %c0_i32_1 = arith.constant 0 : i32
    return %c0_i32, %c0_i32_0 : i32, i32
  }
  func.func @transform_6(%arg0: i32) -> (i32, i32) {
    %c0_i32 = arith.constant 0 : i32
    %c0_i32_0 = arith.constant 0 : i32
    %c0_i32_1 = arith.constant 0 : i32
    return %c0_i32, %c0_i32_0 : i32, i32
  }
  func.func @transform_7(%arg0: i32) -> (i32, i32) {
    %c0_i32 = arith.constant 0 : i32
    %c0_i32_0 = arith.constant 0 : i32
    %c0_i32_1 = arith.constant 0 : i32
    return %c0_i32, %c0_i32_0 : i32, i32
  }
  func.func @transform_8(%arg0: i32) -> (i32, i32) {
    %c0_i32 = arith.constant 0 : i32
    %c0_i32_0 = arith.constant 0 : i32
    %c0_i32_1 = arith.constant 0 : i32
    return %c0_i32, %c0_i32_0 : i32, i32
  }
  func.func @transform_9(%arg0: i32) -> (i32, i32, i32) {
    %c0_i32 = arith.constant 0 : i32
    %c0_i32_0 = arith.constant 0 : i32
    %c0_i32_1 = arith.constant 0 : i32
    return %arg0, %c0_i32, %c0_i32_0 : i32, i32, i32
  }
}

</mosaic_0001>

<llo_original>
// kernel: tpu_custom_call.1
$region0: #{tpu_custom_call.1}
  #allocation0 [shape = 'u32[]', space=smem, size = 0x4, offset = 0x4, fixed_abs, tag = 'smem constant byte address 0x4 - core index']
  #allocation1 [shape = 'u32[72,128]{1,0:T(1,128)}', space=vmem, size = 0x9000, scoped, tag = 'internal scratch']
  %s0 = inlined_call_operand.vmem [shape: f32[4,16,2], index: 0, kind: input, shape index: {}]
  %s1 = inlined_call_operand.vmem [shape: f32[4,16,32], index: 1, kind: input, shape index: {}]
  %s2 = inlined_call_operand.vmem [shape: f32[2,16,16], index: 2, kind: input, shape index: {}]
  %s3 = inlined_call_operand.vmem [shape: f32[170,32], index: 3, kind: input, shape index: {}]
  %s4 = inlined_call_operand.vmem [shape: f32[170,32], index: 4, kind: input, shape index: {}]
  %s5 = inlined_call_operand.vmem [shape: f32[170,32], index: 5, kind: input, shape index: {}]
  %s6 = inlined_call_operand.vmem [shape: f32[1,32], index: 6, kind: input, shape index: {}]
  %s7 = inlined_call_operand.vmem [shape: f32[1,32], index: 7, kind: input, shape index: {}]
  %s8 = inlined_call_operand.vmem [shape: f32[1,32], index: 8, kind: input, shape index: {}]
  %s9 = inlined_call_operand.hbm [shape: f32[4,16,32], index: 9, kind: output, shape index: {}]
  %s10 = sld [smem:[#allocation0]]
  $region69: #{tpu_custom_call.1} parent=0
    _
  %s12 = ssub.s32 1, %s10
  %s13 = scalar_select 0, %s12, %s10
  $region1: #{tpu_custom_call.1} parent=0
    #allocation2 [shape = 'u8[32768]{0}', space=vmem, size = 0x8000, scoped, tag = 'output window, operand 0']
    #allocation3 [shape = 's32[2]{0}', space=sflag, size = 0x8, scoped, tag = 'scoped memory for tpu_custom_call.1']
    %14 = vsyncpa [#allocation3], 0
    %s15 = scalar_lea.sflag [#allocation3], 1
    %16 = vsyncpa %s15, 0
    loop: start=0, step=1, limit=4
    $region2: #{tpu_custom_call.1} parent=1 // loop_pre_header
      _
    $region3: #{tpu_custom_call.1} parent=1 // loop_header
      %s18 = sphi 0, %s22
      %p19 = scmp.ge.s32.totalorder %s18, 4
      %s28 = sphi 0, %s30
      %s31 = sphi 0, %s28
      %s32 = sphi 0, %s31
      %s48 = sphi 0, %s32
      %s54 = sphi 0, %s56
      %s57 = sphi 0, %s54
      %s58 = sphi 0, %s57
      %s74 = sphi 0, %s58
      %s78 = sphi 0, %s78
      %s80 = sphi 0, %s78
      %s81 = sphi 0, %s80
      %s95 = sphi 0, %s81
      %s99 = sphi 0, %s99
      %s101 = sphi 0, %s99
      %s102 = sphi 0, %s101
      %s116 = sphi 0, %s102
      %s120 = sphi 0, %s120
      %s122 = sphi 0, %s120
      %s123 = sphi 0, %s122
      %s137 = sphi 0, %s123
      %s141 = sphi 0, %s141
      %s143 = sphi 0, %s141
      %s144 = sphi 0, %s143
      %s158 = sphi 0, %s144
      %s162 = sphi 0, %s162
      %s164 = sphi 0, %s162
      %s165 = sphi 0, %s164
      %s179 = sphi 0, %s165
      %s183 = sphi 0, %s183
      %s185 = sphi 0, %s183
      %s186 = sphi 0, %s185
      %s200 = sphi 0, %s186
      %s204 = sphi 0, %s204
      %s206 = sphi 0, %s204
      %s207 = sphi 0, %s206
      %s221 = sphi 0, %s207
      %s227 = sphi 0, %s229
      %s230 = sphi 0, %s227
      %s231 = sphi 0, %s230
      %s247 = sphi 0, %s231
    $region4: #{tpu_custom_call.1} parent=1 // loop_header_branch
      %21 = sbr.rel (%p19) target = $region8
    $region5: #{tpu_custom_call.1} parent=1 // loop_body
      %s23 = ssub.s32 %s18, 1
      %s24 = ssub.s32 %s18, 2
      %s25 = sadd.s32 %s18, 1
      %s26 = ssub.s32 %s18, %s25
      %p27 = scmp.eq.s32.totalorder %s26, 0
      %s29 = sadd.s32 %s28, 1
      %s30 = scalar_select %p27, %s28, %s29
      %p33 = pneg %p27
      %p34 = scmp.eq.s32.totalorder %s18, 1
      %p35 = por %p33, %p34
      %p36 = scmp.ne.s32.totalorder %s28, %s31
      %p37 = scmp.eq.s32.totalorder %s18, 0
      %p38 = por %p36, %p37
      %p39 = scmp.ne.s32.totalorder %s28, %s31
      %p40 = scmp.eq.s32.totalorder %s23, 1
      %p41 = por %p39, %p40
      %p42 = scmp.ne.s32.totalorder %s31, %s32
      %p43 = scmp.eq.s32.totalorder %s23, 0
      %p44 = por %p42, %p43
      %p45 = scmp.ne.s32.totalorder %s31, %s32
      %p46 = scmp.eq.s32.totalorder %s24, 1
      %p47 = por %p45, %p46
      %p49 = scmp.ne.s32.totalorder %s32, %s48
      %p50 = scmp.eq.s32.totalorder %s24, 0
      %p51 = por %p49, %p50
      %s52 = ssub.s32 %s18, %s25
      %p53 = scmp.eq.s32.totalorder %s52, 0
      %s55 = sadd.s32 %s54, 1
      %s56 = scalar_select %p53, %s54, %s55
      %p59 = pneg %p53
      %p60 = scmp.eq.s32.totalorder %s18, 1
      %p61 = por %p59, %p60
      %p62 = scmp.ne.s32.totalorder %s54, %s57
      %p63 = scmp.eq.s32.totalorder %s18, 0
      %p64 = por %p62, %p63
      %p65 = scmp.ne.s32.totalorder %s54, %s57
      %p66 = scmp.eq.s32.totalorder %s23, 1
      %p67 = por %p65, %p66
      %p68 = scmp.ne.s32.totalorder %s57, %s58
      %p69 = scmp.eq.s32.totalorder %s23, 0
      %p70 = por %p68, %p69
      %p71 = scmp.ne.s32.totalorder %s57, %s58
      %p72 = scmp.eq.s32.totalorder %s24, 1
      %p73 = por %p71, %p72
      %p75 = scmp.ne.s32.totalorder %s58, %s74
      %p76 = scmp.eq.s32.totalorder %s24, 0
      %p77 = por %p75, %p76
      %s79 = sadd.s32 %s78, 1
      %p82 = scmp.eq.s32.totalorder %s18, 1
      %p83 = scmp.ne.s32.totalorder %s78, %s80
      %p84 = scmp.eq.s32.totalorder %s18, 0
      %p85 = por %p83, %p84
      %p86 = scmp.ne.s32.totalorder %s78, %s80
      %p87 = scmp.eq.s32.totalorder %s23, 1
      %p88 = por %p86, %p87
      %p89 = scmp.ne.s32.totalorder %s80, %s81
      %p90 = scmp.eq.s32.totalorder %s23, 0
      %p91 = por %p89, %p90
      %p92 = scmp.ne.s32.totalorder %s80, %s81
      %p93 = scmp.eq.s32.totalorder %s24, 1
      %p94 = por %p92, %p93
      %p96 = scmp.ne.s32.totalorder %s81, %s95
      %p97 = scmp.eq.s32.totalorder %s24, 0
      %p98 = por %p96, %p97
      %s100 = sadd.s32 %s99, 1
      %p103 = scmp.eq.s32.totalorder %s18, 1
      %p104 = scmp.ne.s32.totalorder %s99, %s101
      %p105 = scmp.eq.s32.totalorder %s18, 0
      %p106 = por %p104, %p105
      %p107 = scmp.ne.s32.totalorder %s99, %s101
      %p108 = scmp.eq.s32.totalorder %s23, 1
      %p109 = por %p107, %p108
      %p110 = scmp.ne.s32.totalorder %s101, %s102
      %p111 = scmp.eq.s32.totalorder %s23, 0
      %p112 = por %p110, %p111
      %p113 = scmp.ne.s32.totalorder %s101, %s102
      %p114 = scmp.eq.s32.totalorder %s24, 1
      %p115 = por %p113, %p114
      %p117 = scmp.ne.s32.totalorder %s102, %s116
      %p118 = scmp.eq.s32.totalorder %s24, 0
      %p119 = por %p117, %p118
      %s121 = sadd.s32 %s120, 1
      %p124 = scmp.eq.s32.totalorder %s18, 1
      %p125 = scmp.ne.s32.totalorder %s120, %s122
      %p126 = scmp.eq.s32.totalorder %s18, 0
      %p127 = por %p125, %p126
      %p128 = scmp.ne.s32.totalorder %s120, %s122
      %p129 = scmp.eq.s32.totalorder %s23, 1
      %p130 = por %p128, %p129
      %p131 = scmp.ne.s32.totalorder %s122, %s123
      %p132 = scmp.eq.s32.totalorder %s23, 0
      %p133 = por %p131, %p132
      %p134 = scmp.ne.s32.totalorder %s122, %s123
      %p135 = scmp.eq.s32.totalorder %s24, 1
      %p136 = por %p134, %p135
      %p138 = scmp.ne.s32.totalorder %s123, %s137
      %p139 = scmp.eq.s32.totalorder %s24, 0
      %p140 = por %p138, %p139
      %s142 = sadd.s32 %s141, 1
      %p145 = scmp.eq.s32.totalorder %s18, 1
      %p146 = scmp.ne.s32.totalorder %s141, %s143
      %p147 = scmp.eq.s32.totalorder %s18, 0
      %p148 = por %p146, %p147
      %p149 = scmp.ne.s32.totalorder %s141, %s143
      %p150 = scmp.eq.s32.totalorder %s23, 1
      %p151 = por %p149, %p150
      %p152 = scmp.ne.s32.totalorder %s143, %s144
      %p153 = scmp.eq.s32.totalorder %s23, 0
      %p154 = por %p152, %p153
      %p155 = scmp.ne.s32.totalorder %s143, %s144
      %p156 = scmp.eq.s32.totalorder %s24, 1
      %p157 = por %p155, %p156
      %p159 = scmp.ne.s32.totalorder %s144, %s158
      %p160 = scmp.eq.s32.totalorder %s24, 0
      %p161 = por %p159, %p160
      %s163 = sadd.s32 %s162, 1
      %p166 = scmp.eq.s32.totalorder %s18, 1
      %p167 = scmp.ne.s32.totalorder %s162, %s164
      %p168 = scmp.eq.s32.totalorder %s18, 0
      %p169 = por %p167, %p168
      %p170 = scmp.ne.s32.totalorder %s162, %s164
      %p171 = scmp.eq.s32.totalorder %s23, 1
      %p172 = por %p170, %p171
      %p173 = scmp.ne.s32.totalorder %s164, %s165
      %p174 = scmp.eq.s32.totalorder %s23, 0
      %p175 = por %p173, %p174
      %p176 = scmp.ne.s32.totalorder %s164, %s165
      %p177 = scmp.eq.s32.totalorder %s24, 1
      %p178 = por %p176, %p177
      %p180 = scmp.ne.s32.totalorder %s165, %s179
      %p181 = scmp.eq.s32.totalorder %s24, 0
      %p182 = por %p180, %p181
      %s184 = sadd.s32 %s183, 1
      %p187 = scmp.eq.s32.totalorder %s18, 1
      %p188 = scmp.ne.s32.totalorder %s183, %s185
      %p189 = scmp.eq.s32.totalorder %s18, 0
      %p190 = por %p188, %p189
      %p191 = scmp.ne.s32.totalorder %s183, %s185
      %p192 = scmp.eq.s32.totalorder %s23, 1
      %p193 = por %p191, %p192
      %p194 = scmp.ne.s32.totalorder %s185, %s186
      %p195 = scmp.eq.s32.totalorder %s23, 0
      %p196 = por %p194, %p195
      %p197 = scmp.ne.s32.totalorder %s185, %s186
      %p198 = scmp.eq.s32.totalorder %s24, 1
      %p199 = por %p197, %p198
      %p201 = scmp.ne.s32.totalorder %s186, %s200
      %p202 = scmp.eq.s32.totalorder %s24, 0
      %p203 = por %p201, %p202
      %s205 = sadd.s32 %s204, 1
      %p208 = scmp.eq.s32.totalorder %s18, 1
      %p209 = scmp.ne.s32.totalorder %s204, %s206
      %p210 = scmp.eq.s32.totalorder %s18, 0
      %p211 = por %p209, %p210
      %p212 = scmp.ne.s32.totalorder %s204, %s206
      %p213 = scmp.eq.s32.totalorder %s23, 1
      %p214 = por %p212, %p213
      %p215 = scmp.ne.s32.totalorder %s206, %s207
      %p216 = scmp.eq.s32.totalorder %s23, 0
      %p217 = por %p215, %p216
      %p218 = scmp.ne.s32.totalorder %s206, %s207
      %p219 = scmp.eq.s32.totalorder %s24, 1
      %p220 = por %p218, %p219
      %p222 = scmp.ne.s32.totalorder %s207, %s221
      %p223 = scmp.eq.s32.totalorder %s24, 0
      %p224 = por %p222, %p223
      %s225 = ssub.s32 %s18, %s25
      %p226 = scmp.eq.s32.totalorder %s225, 0
      %s228 = sadd.s32 %s227, 1
      %s229 = scalar_select %p226, %s227, %s228
      %p232 = pneg %p226
      %p233 = scmp.eq.s32.totalorder %s18, 1
      %p234 = por %p232, %p233
      %p235 = scmp.ne.s32.totalorder %s227, %s230
      %p236 = scmp.eq.s32.totalorder %s18, 0
      %p237 = por %p235, %p236
      %p238 = scmp.ne.s32.totalorder %s227, %s230
      %p239 = scmp.eq.s32.totalorder %s23, 1
      %p240 = por %p238, %p239
      %p241 = scmp.ne.s32.totalorder %s230, %s231
      %p242 = scmp.eq.s32.totalorder %s23, 0
      %p243 = por %p241, %p242
      %p244 = scmp.ne.s32.totalorder %s230, %s231
      %p245 = scmp.eq.s32.totalorder %s24, 1
      %p246 = por %p244, %p245
      %p248 = scmp.ne.s32.totalorder %s231, %s247
      %p249 = scmp.eq.s32.totalorder %s24, 0
      %p250 = por %p248, %p249
      %p251 = scmp.le.s32.totalorder 1, %s18
      %p252 = scmp.lt.s32.totalorder %s18, 3
      %p253 = pnand %p251, %p252
      %p254 = pneg %p253
      // Predicated region
      $region9: #{tpu_custom_call.1} parent=5 // pred_check
        _
      $region10: #{tpu_custom_call.1} parent=5 // pred_check_branch
        %256 = sbr.rel (%p253) target = $region12
      $region11: #{tpu_custom_call.1} parent=5 // pred_region
        %s257 = ssub.s32 %s18, 1
        // Predicated region
        $region13: #{tpu_custom_call.1} parent=11 // pred_check
          %p258 = pneg %p91
        $region14: #{tpu_custom_call.1} parent=11 // pred_check_branch
          %260 = sbr.rel (%p258) target = $region16
        $region15: #{tpu_custom_call.1} parent=11 // pred_region
          _
        $region16: #{tpu_custom_call.1} parent=11 // pred_fallthru
          _
        // Predicated region
        $region17: #{tpu_custom_call.1} parent=11 // pred_check
          %p261 = pneg %p112
        $region18: #{tpu_custom_call.1} parent=11 // pred_check_branch
          %263 = sbr.rel (%p261) target = $region20
        $region19: #{tpu_custom_call.1} parent=11 // pred_region
          _
        $region20: #{tpu_custom_call.1} parent=11 // pred_fallthru
          _
        // Predicated region
        $region21: #{tpu_custom_call.1} parent=11 // pred_check
          %p264 = pneg %p133
        $region22: #{tpu_custom_call.1} parent=11 // pred_check_branch
          %266 = sbr.rel (%p264) target = $region24
        $region23: #{tpu_custom_call.1} parent=11 // pred_region
          _
        $region24: #{tpu_custom_call.1} parent=11 // pred_fallthru
          _
        // Predicated region
        $region25: #{tpu_custom_call.1} parent=11 // pred_check
          %p267 = pneg %p154
        $region26: #{tpu_custom_call.1} parent=11 // pred_check_branch
          %269 = sbr.rel (%p267) target = $region28
        $region27: #{tpu_custom_call.1} parent=11 // pred_region
          _
        $region28: #{tpu_custom_call.1} parent=11 // pred_fallthru
          _
        // Predicated region
        $region29: #{tpu_custom_call.1} parent=11 // pred_check
          %p270 = pneg %p175
        $region30: #{tpu_custom_call.1} parent=11 // pred_check_branch
          %272 = sbr.rel (%p270) target = $region32
        $region31: #{tpu_custom_call.1} parent=11 // pred_region
          _
        $region32: #{tpu_custom_call.1} parent=11 // pred_fallthru
          _
        // Predicated region
        $region33: #{tpu_custom_call.1} parent=11 // pred_check
          %p273 = pneg %p196
        $region34: #{tpu_custom_call.1} parent=11 // pred_check_branch
          %275 = sbr.rel (%p273) target = $region36
        $region35: #{tpu_custom_call.1} parent=11 // pred_region
          _
        $region36: #{tpu_custom_call.1} parent=11 // pred_fallthru
          _
        // Predicated region
        $region37: #{tpu_custom_call.1} parent=11 // pred_check
          %p276 = pneg %p217
        $region38: #{tpu_custom_call.1} parent=11 // pred_check_branch
          %278 = sbr.rel (%p276) target = $region40
        $region39: #{tpu_custom_call.1} parent=11 // pred_region
          _
        $region40: #{tpu_custom_call.1} parent=11 // pred_fallthru
          _
      $region12: #{tpu_custom_call.1} parent=5 // pred_fallthru
        _
      %p279 = scmp.lt.s32.totalorder %s18, 2
      // Predicated region
      $region41: #{tpu_custom_call.1} parent=5 // pred_check
        %p280 = pneg %p279
      $region42: #{tpu_custom_call.1} parent=5 // pred_check_branch
        %282 = sbr.rel (%p280) target = $region44
      $region43: #{tpu_custom_call.1} parent=5 // pred_region
        // Predicated region
        $region45: #{tpu_custom_call.1} parent=43 // pred_check
          %p283 = pneg %p38
        $region46: #{tpu_custom_call.1} parent=43 // pred_check_branch
          %285 = sbr.rel (%p283) target = $region48
        $region47: #{tpu_custom_call.1} parent=43 // pred_region
          %s286 = smul.u32 2, %s18
          %p287 = scmp.lt.s32.totalorder %s286, 3
          %s288 = scalar_select %p287, %s286, 3
          %s289 = smul.addr %s288, 2
          %s290 = smul.addr %s289, 8
          %s291 = scalar_lea.vmem %s0, %s290
          %s292 = smul.u32 2, %s18
        $region48: #{tpu_custom_call.1} parent=43 // pred_fallthru
          _
        // Predicated region
        $region49: #{tpu_custom_call.1} parent=43 // pred_check
          %p293 = pneg %p64
        $region50: #{tpu_custom_call.1} parent=43 // pred_check_branch
          %295 = sbr.rel (%p293) target = $region52
        $region51: #{tpu_custom_call.1} parent=43 // pred_region
          %s296 = smul.u32 2, %s18
          %p297 = scmp.lt.s32.totalorder %s296, 3
          %s298 = scalar_select %p297, %s296, 3
          %s299 = smul.addr %s298, 2
          %s300 = smul.addr %s299, 8
          %s301 = scalar_lea.vmem %s1, %s300
          %s302 = smul.u32 2, %s18
        $region52: #{tpu_custom_call.1} parent=43 // pred_fallthru
          _
      $region44: #{tpu_custom_call.1} parent=5 // pred_fallthru
        _
      %p303 = scmp.le.s32.totalorder 1, %s18
      %p304 = scmp.lt.s32.totalorder %s18, 3
      %p305 = pnand %p303, %p304
      %p306 = pneg %p305
      // Predicated region
      $region53: #{tpu_custom_call.1} parent=5 // pred_check
        _
      $region54: #{tpu_custom_call.1} parent=5 // pred_check_branch
        %308 = sbr.rel (%p305) target = $region56
      $region55: #{tpu_custom_call.1} parent=5 // pred_region
        %s309 = ssub.s32 %s18, 1
        %s310 = smul.u32 2, %s23
        %p311 = scmp.lt.s32.totalorder %s310, 3
        %s312 = scalar_select %p311, %s310, 3
        %s313 = smul.addr %s312, 2
        %s314 = smul.addr %s313, 8
        %s315 = scalar_lea.vmem %s0, %s314
        %p316 = pneg %p44
        %p317 = pneg %p41
        %s318 = smul.u32 2, %s23
        %p319 = scmp.lt.s32.totalorder %s318, 3
        %s320 = scalar_select %p319, %s318, 3
        %s321 = smul.addr %s320, 2
        %s322 = smul.addr %s321, 8
        %s323 = scalar_lea.vmem %s1, %s322
        %p324 = pneg %p70
        %p325 = pneg %p67
        %p326 = pneg %p91
        %p327 = pneg %p88
        %p328 = pneg %p112
        %p329 = pneg %p109
        %p330 = pneg %p133
        %p331 = pneg %p130
        %p332 = pneg %p154
        %p333 = pneg %p151
        %p334 = pneg %p175
        %p335 = pneg %p172
        %p336 = pneg %p196
        %p337 = pneg %p193
        %p338 = pneg %p217
        %p339 = pneg %p214
        %p340 = pneg %p243
        %p341 = pneg %p240
        %s342 = sand.u32 %s230, 1
        %s343 = scalar_lea.sflag [#allocation3], %s342
        %s344 = sand.u32 %s230, 1
        %s345 = smul.addr %s344, 32
        %s346 = scalar_lea.vmem [#allocation2], %s345
        %s347 = smul.u32 2, %s23
        %p348 = scmp.lt.s32.totalorder %s347, 3
        %s349 = scalar_select %p348, %s347, 3
        %s350 = smul.addr %s349, 2
        %s351 = smul.addr %s350, 8
        %s352 = scalar_lea.vmem %s0, %s351
        %s353 = smul.u32 2, %s23
        %s354 = smul.u32 2, %s23
        %p355 = scmp.lt.s32.totalorder %s354, 3
        %s356 = scalar_select %p355, %s354, 3
        %s357 = smul.addr %s356, 2
        %s358 = smul.addr %s357, 8
        %s359 = scalar_lea.vmem %s1, %s358
        %s360 = smul.u32 2, %s23
        %s361 = smul.u32 2, %s23
        %v362 = vld [vmem:[%s352] sm:$0xff]
        %v363 = vld [vmem:[%s352 + $0x8] sm:$0xff]
        %v364 = vld [vmem:[%s352 + $0x10] sm:$0xff]
        %v365 = vld [vmem:[%s352 + $0x18] sm:$0xff]
        %v366 = vld [vmem:[%s359] sm:$0xff]
        %v367 = vld [vmem:[%s359 + $0x8] sm:$0xff]
        %v368 = vld [vmem:[%s359 + $0x10] sm:$0xff]
        %v369 = vld [vmem:[%s359 + $0x18] sm:$0xff]
        %v370 = vld [vmem:[%s2] sm:$0xff]
        %v371 = vld [vmem:[%s2 + $0x8] sm:$0xff]
        %v372 = vld [vmem:[%s2 + $0x10] sm:$0xff]
        %v373 = vld [vmem:[%s2 + $0x18] sm:$0xff]
        %376 = vrot.lane.b32.xlu0 %v364, 2
        %v377 = vpop.permute.xlu0 %376
        %378 = vrot.lane.b32.xlu0 %v365, 2
        %v379 = vpop.permute.xlu0 %378
        %vm382 = vcmask 15360
        %v383 = vsel %vm382, %v362, %v377
        %v384 = vsel %vm382, %v363, %v379
        %387 = vrot.lane.b32.xlu0 %v368, 32
        %v388 = vpop.permute.xlu0 %387
        %389 = vrot.lane.b32.xlu0 %v369, 32
        %v390 = vpop.permute.xlu0 %389
        %vm393 = vcmask 261120
        %v394 = vsel %vm393, %v366, %v388
        %v395 = vsel %vm393, %v367, %v390
        %vm396 = vcmask 130048
        %v398 = vsel %vm396, %v370, 0
        %v401 = vsel %vm396, %v371, 0
        %403 = vmatpush.msra.mxu0 0.0
        %404 = vmatpush.msra.mxu0 0.0
        %405 = vmatpush.msra.mxu0 0.0
        %406 = vmatpush.msra.mxu0 0.0
        %407 = vmatpush.msra.mxu0 0.0
        %408 = vmatpush.msra.mxu0 0.0
        %409 = vmatpush.msra.mxu0 0.0
        %410 = vmatpush.msra.mxu0 0.0
        %411 = vmatpush.msra.mxu0 0.0
        %412 = vmatpush.msra.mxu0 0.0
        %413 = vmatpush.msra.mxu0 0.0
        %414 = vmatpush.msra.mxu0 0.0
        %415 = vmatpush.msra.mxu0 0.0
        %416 = vmatpush.msra.mxu0 0.0
        %417 = vmatpush.msra.mxu0 %v384
        %418 = vmatpush.msra.mxu0 %v383
        %419 = vmatmul.f32.gmra.mxu0 %v398
        %v420 = vpop.f32.mrf.mxu0
        %v421 = vadd.f32 0.0, %v420
        %422 = vmatmul.f32.gmra.mxu0 %v401
        %v423 = vpop.f32.mrf.mxu0
        %v424 = vadd.f32 0.0, %v423
        %425 = vdwg.mxu0
        %426 = vmatpush.msra.mxu0 0.0
        %427 = vmatpush.msra.mxu0 0.0
        %428 = vmatpush.msra.mxu0 0.0
        %429 = vmatpush.msra.mxu0 0.0
        %430 = vmatpush.msra.mxu0 0.0
        %431 = vmatpush.msra.mxu0 0.0
        %432 = vmatpush.msra.mxu0 0.0
        %433 = vmatpush.msra.mxu0 0.0
        %434 = vmatpush.msra.mxu0 0.0
        %435 = vmatpush.msra.mxu0 0.0
        %436 = vmatpush.msra.mxu0 0.0
        %437 = vmatpush.msra.mxu0 0.0
        %438 = vmatpush.msra.mxu0 0.0
        %439 = vmatpush.msra.mxu0 0.0
        %440 = vmatpush.msra.mxu0 %v424
        %441 = vmatpush.msra.mxu0 %v421
        %442 = vmatmul.f32.gmra.mxu0 %v398
        %v443 = vpop.f32.mrf.mxu0
        %v444 = vadd.f32 0.0, %v443
        %445 = vmatmul.f32.gmra.mxu0 %v401
        %v446 = vpop.f32.mrf.mxu0
        %v447 = vadd.f32 0.0, %v446
        %448 = vdwg.mxu0
        %v449 = vmul.f32 %v444, 2.0
        %v450 = vmul.f32 %v447, 2.0
        %v451 = vsub.f32 %v449, %v383
        %v452 = vsub.f32 %v450, %v384
        %v454 = vsel %vm396, %v372, 0
        %v457 = vsel %vm396, %v373, 0
        %459 = vmatpush.msra.mxu0 0.0
        %460 = vmatpush.msra.mxu0 0.0
        %461 = vmatpush.msra.mxu0 0.0
        %462 = vmatpush.msra.mxu0 0.0
        %463 = vmatpush.msra.mxu0 0.0
        %464 = vmatpush.msra.mxu0 0.0
        %465 = vmatpush.msra.mxu0 0.0
        %466 = vmatpush.msra.mxu0 0.0
        %467 = vmatpush.msra.mxu0 0.0
        %468 = vmatpush.msra.mxu0 0.0
        %469 = vmatpush.msra.mxu0 0.0
        %470 = vmatpush.msra.mxu0 0.0
        %471 = vmatpush.msra.mxu0 0.0
        %472 = vmatpush.msra.mxu0 0.0
        %473 = vmatpush.msra.mxu0 %v424
        %474 = vmatpush.msra.mxu0 %v421
        %475 = vmatmul.f32.gmra.mxu0 %v454
        %v476 = vpop.f32.mrf.mxu0
        %v477 = vadd.f32 0.0, %v476
        %478 = vmatmul.f32.gmra.mxu0 %v457
        %v479 = vpop.f32.mrf.mxu0
        %v480 = vadd.f32 0.0, %v479
        %481 = vdwg.mxu0
        %482 = vmatpush.msra.mxu0 0.0
        %483 = vmatpush.msra.mxu0 0.0
        %484 = vmatpush.msra.mxu0 0.0
        %485 = vmatpush.msra.mxu0 0.0
        %486 = vmatpush.msra.mxu0 0.0
        %487 = vmatpush.msra.mxu0 0.0
        %488 = vmatpush.msra.mxu0 0.0
        %489 = vmatpush.msra.mxu0 0.0
        %490 = vmatpush.msra.mxu0 0.0
        %491 = vmatpush.msra.mxu0 0.0
        %492 = vmatpush.msra.mxu0 0.0
        %493 = vmatpush.msra.mxu0 0.0
        %494 = vmatpush.msra.mxu0 0.0
        %495 = vmatpush.msra.mxu0 0.0
        %496 = vmatpush.msra.mxu0 %v480
        %497 = vmatpush.msra.mxu0 %v477
        %498 = vmatmul.f32.gmra.mxu0 %v454
        %v499 = vpop.f32.mrf.mxu0
        %v500 = vadd.f32 0.0, %v499
        %501 = vmatmul.f32.gmra.mxu0 %v457
        %v502 = vpop.f32.mrf.mxu0
        %v503 = vadd.f32 0.0, %v502
        %504 = vdwg.mxu0
        %v505 = vmul.f32 %v500, 2.0
        %v506 = vmul.f32 %v503, 2.0
        %v507 = vsub.f32 %v505, %v421
        %v508 = vsub.f32 %v506, %v424
        %511 = vrot.lane.b32.xlu0 %v421, 2
        %v512 = vpop.permute.xlu0 %511
        %513 = vrot.lane.b32.xlu0 %v424, 2
        %v514 = vpop.permute.xlu0 %513
        %519 = vrot.lane.b32.xlu0 %v451, 4
        %v520 = vpop.permute.xlu0 %519
        %521 = vrot.lane.b32.xlu0 %v452, 4
        %v522 = vpop.permute.xlu0 %521
        %527 = vrot.lane.b32.xlu0 %v477, 6
        %v528 = vpop.permute.xlu0 %527
        %529 = vrot.lane.b32.xlu0 %v480, 6
        %v530 = vpop.permute.xlu0 %529
        %535 = vrot.lane.b32.xlu0 %v507, 8
        %v536 = vpop.permute.xlu0 %535
        %537 = vrot.lane.b32.xlu0 %v508, 8
        %v538 = vpop.permute.xlu0 %537
        %v541 = vsel %vm382, %v383, %v512
        %v542 = vsel %vm382, %v384, %v514
        %vm543 = vcmask 31744
        %v544 = vsel %vm543, %v541, %v520
        %v545 = vsel %vm543, %v542, %v522
        %vm546 = vcmask 48128
        %v547 = vsel %vm546, %v544, %v528
        %v548 = vsel %vm546, %v545, %v530
        %vm549 = vcmask 64512
        %v550 = vsel %vm549, %v547, %v536
        %v551 = vsel %vm549, %v548, %v538
        %554 = vrot.lane.b32.xlu0 %v383, 126
        %v555 = vpop.permute.xlu0 %554
        %556 = vrot.lane.b32.xlu0 %v384, 126
        %v557 = vpop.permute.xlu0 %556
        %560 = vrot.lane.b32.xlu0 %v451, 2
        %v561 = vpop.permute.xlu0 %560
        %562 = vrot.lane.b32.xlu0 %v452, 2
        %v563 = vpop.permute.xlu0 %562
        %566 = vrot.lane.b32.xlu0 %v477, 4
        %v567 = vpop.permute.xlu0 %566
        %568 = vrot.lane.b32.xlu0 %v480, 4
        %v569 = vpop.permute.xlu0 %568
        %572 = vrot.lane.b32.xlu0 %v507, 6
        %v573 = vpop.permute.xlu0 %572
        %574 = vrot.lane.b32.xlu0 %v508, 6
        %v575 = vpop.permute.xlu0 %574
        %v578 = vsel %vm382, %v555, %v421
        %v579 = vsel %vm382, %v557, %v424
        %v580 = vsel %vm543, %v578, %v561
        %v581 = vsel %vm543, %v579, %v563
        %v582 = vsel %vm546, %v580, %v567
        %v583 = vsel %vm546, %v581, %v569
        %v584 = vsel %vm549, %v582, %v573
        %v585 = vsel %vm549, %v583, %v575
        %586 = vmatpush.msra.mxu0 0.0
        %587 = vmatpush.msra.mxu0 0.0
        %588 = vmatpush.msra.mxu0 0.0
        %589 = vmatpush.msra.mxu0 0.0
        %590 = vmatpush.msra.mxu0 0.0
        %591 = vmatpush.msra.mxu0 0.0
        %592 = vmatpush.msra.mxu0 0.0
        %593 = vmatpush.msra.mxu0 0.0
        %594 = vmatpush.msra.mxu0 0.0
        %595 = vmatpush.msra.mxu0 0.0
        %596 = vmatpush.msra.mxu0 0.0
        %597 = vmatpush.msra.mxu0 0.0
        %598 = vmatpush.msra.mxu0 0.0
        %599 = vmatpush.msra.mxu0 0.0
        %600 = vmatpush.msra.mxu0 %v395
        %601 = vmatpush.msra.mxu0 %v394
        %602 = vmatmul.f32.gmra.mxu0 %v398
        %v603 = vpop.f32.mrf.mxu0
        %v604 = vadd.f32 0.0, %v603
        %605 = vmatmul.f32.gmra.mxu0 %v401
        %v606 = vpop.f32.mrf.mxu0
        %v607 = vadd.f32 0.0, %v606
        %608 = vdwg.mxu0
        %609 = vmatpush.msra.mxu0 0.0
        %610 = vmatpush.msra.mxu0 0.0
        %611 = vmatpush.msra.mxu0 0.0
        %612 = vmatpush.msra.mxu0 0.0
        %613 = vmatpush.msra.mxu0 0.0
        %614 = vmatpush.msra.mxu0 0.0
        %615 = vmatpush.msra.mxu0 0.0
        %616 = vmatpush.msra.mxu0 0.0
        %617 = vmatpush.msra.mxu0 0.0
        %618 = vmatpush.msra.mxu0 0.0
        %619 = vmatpush.msra.mxu0 0.0
        %620 = vmatpush.msra.mxu0 0.0
        %621 = vmatpush.msra.mxu0 0.0
        %622 = vmatpush.msra.mxu0 0.0
        %623 = vmatpush.msra.mxu0 %v607
        %624 = vmatpush.msra.mxu0 %v604
        %625 = vmatmul.f32.gmra.mxu0 %v398
        %v626 = vpop.f32.mrf.mxu0
        %v627 = vadd.f32 0.0, %v626
        %628 = vmatmul.f32.gmra.mxu0 %v401
        %v629 = vpop.f32.mrf.mxu0
        %v630 = vadd.f32 0.0, %v629
        %631 = vdwg.mxu0
        %v632 = vmul.f32 %v627, 2.0
        %v633 = vmul.f32 %v630, 2.0
        %v634 = vsub.f32 %v632, %v394
        %v635 = vsub.f32 %v633, %v395
        %636 = vmatpush.msra.mxu0 0.0
        %637 = vmatpush.msra.mxu0 0.0
        %638 = vmatpush.msra.mxu0 0.0
        %639 = vmatpush.msra.mxu0 0.0
        %640 = vmatpush.msra.mxu0 0.0
        %641 = vmatpush.msra.mxu0 0.0
        %642 = vmatpush.msra.mxu0 0.0
        %643 = vmatpush.msra.mxu0 0.0
        %644 = vmatpush.msra.mxu0 0.0
        %645 = vmatpush.msra.mxu0 0.0
        %646 = vmatpush.msra.mxu0 0.0
        %647 = vmatpush.msra.mxu0 0.0
        %648 = vmatpush.msra.mxu0 0.0
        %649 = vmatpush.msra.mxu0 0.0
        %650 = vmatpush.msra.mxu0 %v607
        %651 = vmatpush.msra.mxu0 %v604
        %652 = vmatmul.f32.gmra.mxu0 %v454
        %v653 = vpop.f32.mrf.mxu0
        %v654 = vadd.f32 0.0, %v653
        %655 = vmatmul.f32.gmra.mxu0 %v457
        %v656 = vpop.f32.mrf.mxu0
        %v657 = vadd.f32 0.0, %v656
        %658 = vdwg.mxu0
        %659 = vmatpush.msra.mxu0 0.0
        %660 = vmatpush.msra.mxu0 0.0
        %661 = vmatpush.msra.mxu0 0.0
        %662 = vmatpush.msra.mxu0 0.0
        %663 = vmatpush.msra.mxu0 0.0
        %664 = vmatpush.msra.mxu0 0.0
        %665 = vmatpush.msra.mxu0 0.0
        %666 = vmatpush.msra.mxu0 0.0
        %667 = vmatpush.msra.mxu0 0.0
        %668 = vmatpush.msra.mxu0 0.0
        %669 = vmatpush.msra.mxu0 0.0
        %670 = vmatpush.msra.mxu0 0.0
        %671 = vmatpush.msra.mxu0 0.0
        %672 = vmatpush.msra.mxu0 0.0
        %673 = vmatpush.msra.mxu0 %v657
        %674 = vmatpush.msra.mxu0 %v654
        %675 = vmatmul.f32.gmra.mxu0 %v454
        %v676 = vpop.f32.mrf.mxu0
        %v677 = vadd.f32 0.0, %v676
        %678 = vmatmul.f32.gmra.mxu0 %v457
        %v679 = vpop.f32.mrf.mxu0
        %v680 = vadd.f32 0.0, %v679
        %681 = vdwg.mxu0
        %v682 = vmul.f32 %v677, 2.0
        %v683 = vmul.f32 %v680, 2.0
        %v684 = vsub.f32 %v682, %v604
        %v685 = vsub.f32 %v683, %v607
        %688 = vrot.lane.b32.xlu0 %v604, 32
        %v689 = vpop.permute.xlu0 %688
        %690 = vrot.lane.b32.xlu0 %v607, 32
        %v691 = vpop.permute.xlu0 %690
        %696 = vrot.lane.b32.xlu0 %v634, 64
        %v697 = vpop.permute.xlu0 %696
        %698 = vrot.lane.b32.xlu0 %v635, 64
        %v699 = vpop.permute.xlu0 %698
        %704 = vrot.lane.b32.xlu0 %v654, 96
        %v705 = vpop.permute.xlu0 %704
        %706 = vrot.lane.b32.xlu0 %v657, 96
        %v707 = vpop.permute.xlu0 %706
        %v710 = vsel %vm393, %v394, %v689
        %v711 = vsel %vm393, %v395, %v691
        %vm712 = vcmask 523264
        %v713 = vsel %vm712, %v710, %v697
        %v714 = vsel %vm712, %v711, %v699
        %vm715 = vcmask 785408
        %v716 = vsel %vm715, %v713, %v705
        %v717 = vsel %vm715, %v714, %v707
        %720 = vrot.lane.b32.xlu0 %v394, 96
        %v721 = vpop.permute.xlu0 %720
        %722 = vrot.lane.b32.xlu0 %v395, 96
        %v723 = vpop.permute.xlu0 %722
        %726 = vrot.lane.b32.xlu0 %v634, 32
        %v727 = vpop.permute.xlu0 %726
        %728 = vrot.lane.b32.xlu0 %v635, 32
        %v729 = vpop.permute.xlu0 %728
        %732 = vrot.lane.b32.xlu0 %v654, 64
        %v733 = vpop.permute.xlu0 %732
        %734 = vrot.lane.b32.xlu0 %v657, 64
        %v735 = vpop.permute.xlu0 %734
        %740 = vrot.lane.b32.xlu0 %v684, 96
        %v741 = vpop.permute.xlu0 %740
        %742 = vrot.lane.b32.xlu0 %v685, 96
        %v743 = vpop.permute.xlu0 %742
        %v744 = vsel %vm393, %v721, %v604
        %v745 = vsel %vm393, %v723, %v607
        %v746 = vsel %vm712, %v744, %v727
        %v747 = vsel %vm712, %v745, %v729
        %v748 = vsel %vm715, %v746, %v733
        %v749 = vsel %vm715, %v747, %v735
        %754 = vrot.lane.b32.xlu0 %v716, 10
        %v755 = vpop.permute.xlu0 %754
        %756 = vrot.lane.b32.xlu0 %v684, 10
        %v757 = vpop.permute.xlu0 %756
        %758 = vrot.lane.b32.xlu0 %v717, 10
        %v759 = vpop.permute.xlu0 %758
        %760 = vrot.lane.b32.xlu0 %v685, 10
        %v761 = vpop.permute.xlu0 %760
        %762 = vrot.lane.b32.xlu0 %v748, 10
        %v763 = vpop.permute.xlu0 %762
        %764 = vrot.lane.b32.xlu0 %v741, 10
        %v765 = vpop.permute.xlu0 %764
        %766 = vrot.lane.b32.xlu0 %v749, 10
        %v767 = vpop.permute.xlu0 %766
        %768 = vrot.lane.b32.xlu0 %v743, 10
        %v769 = vpop.permute.xlu0 %768
        %vm770 = vcmask 80896
        %v771 = vsel %vm770, %v755, %v757
        %v772 = vsel %vm770, %v759, %v761
        %v773 = vsel %vm770, %v763, %v765
        %v774 = vsel %vm770, %v767, %v769
        %v779 = vsel %vm770, %v550, %v755
        %v780 = vsel %vm770, %v551, %v759
        %v781 = vsel %vm770, %v584, %v763
        %v782 = vsel %vm770, %v585, %v767
        %v783 = vld [vmem:[%s3] sm:$0xff]
        %v784 = vld [vmem:[%s3 + $0x8] sm:$0xff]
        %v785 = vld [vmem:[%s3 + $0x10] sm:$0xff]
        %v786 = vld [vmem:[%s3 + $0x18] sm:$0xff]
        %v787 = vld [vmem:[%s3 + $0x20] sm:$0xff]
        %v788 = vld [vmem:[%s3 + $0x28] sm:$0xff]
        %v789 = vld [vmem:[%s3 + $0x30] sm:$0xff]
        %v790 = vld [vmem:[%s3 + $0x38] sm:$0xff]
        %v791 = vld [vmem:[%s3 + $0x40] sm:$0xff]
        %v792 = vld [vmem:[%s3 + $0x48] sm:$0xff]
        %v793 = vld [vmem:[%s3 + $0x50] sm:$0xff]
        %v794 = vld [vmem:[%s3 + $0x58] sm:$0xff]
        %v795 = vld [vmem:[%s3 + $0x60] sm:$0xff]
        %v796 = vld [vmem:[%s3 + $0x68] sm:$0xff]
        %v797 = vld [vmem:[%s3 + $0x70] sm:$0xff]
        %v798 = vld [vmem:[%s3 + $0x78] sm:$0xff]
        %v799 = vld [vmem:[%s3 + $0x80] sm:$0xff]
        %v800 = vld [vmem:[%s3 + $0x88] sm:$0xff]
        %v801 = vld [vmem:[%s3 + $0x90] sm:$0xff]
        %v802 = vld [vmem:[%s3 + $0x98] sm:$0xff]
        %v803 = vld [vmem:[%s3 + $0xa0] sm:$0xff]
        %v804 = vld [vmem:[%s3 + $0xa8] sm:$0x3]
        %v805 = vld [vmem:[%s6] sm:$0x1]
        %v807 = vperm.slane %v805, 0
        %vm809 = vcmask 343040
        %v810 = vsel %vm809, %v771, 0
        %v812 = vsel %vm809, %v772, 0
        %v814 = vsel %vm809, %v773, 0
        %v816 = vsel %vm809, %v774, 0
        %vm818 = vcmask 1041408
        %v820 = vsel %vm818, %v804, 0
        %822 = vmatpush.msra.mxu0 %v798
        %823 = vmatpush.msra.mxu0 %v797
        %824 = vmatpush.msra.mxu0 %v796
        %825 = vmatpush.msra.mxu0 %v795
        %826 = vmatpush.msra.mxu0 %v794
        %827 = vmatpush.msra.mxu0 %v793
        %828 = vmatpush.msra.mxu0 %v792
        %829 = vmatpush.msra.mxu0 %v791
        %830 = vmatpush.msra.mxu0 %v790
        %831 = vmatpush.msra.mxu0 %v789
        %832 = vmatpush.msra.mxu0 %v788
        %833 = vmatpush.msra.mxu0 %v787
        %834 = vmatpush.msra.mxu0 %v786
        %835 = vmatpush.msra.mxu0 %v785
        %836 = vmatpush.msra.mxu0 %v784
        %837 = vmatpush.msra.mxu0 %v783
        %838 = vmatmul.f32.gmra.mxu0 %v779
        %v839 = vpop.f32.mrf.mxu0
        %v840 = vadd.f32 %v807, %v839
        %841 = vmatmul.f32.gmra.mxu0 %v780
        %v842 = vpop.f32.mrf.mxu0
        %v843 = vadd.f32 %v807, %v842
        %844 = vmatmul.f32.gmra.mxu0 %v781
        %v845 = vpop.f32.mrf.mxu0
        %v846 = vadd.f32 %v807, %v845
        %847 = vmatmul.f32.gmra.mxu0 %v782
        %v848 = vpop.f32.mrf.mxu0
        %v849 = vadd.f32 %v807, %v848
        %850 = vdwg.mxu0
        %851 = vmatpush.msra.mxu0 0.0
        %852 = vmatpush.msra.mxu0 0.0
        %853 = vmatpush.msra.mxu0 0.0
        %854 = vmatpush.msra.mxu0 0.0
        %855 = vmatpush.msra.mxu0 0.0
        %856 = vmatpush.msra.mxu0 0.0
        %857 = vmatpush.msra.mxu0 0.0
        %858 = vmatpush.msra.mxu0 0.0
        %859 = vmatpush.msra.mxu0 0.0
        %860 = vmatpush.msra.mxu0 0.0
        %861 = vmatpush.msra.mxu0 %v820
        %862 = vmatpush.msra.mxu0 %v803
        %863 = vmatpush.msra.mxu0 %v802
        %864 = vmatpush.msra.mxu0 %v801
        %865 = vmatpush.msra.mxu0 %v800
        %866 = vmatpush.msra.mxu0 %v799
        %867 = vmatmul.f32.gmra.mxu0 %v810
        %v868 = vpop.f32.mrf.mxu0
        %v869 = vadd.f32 %v840, %v868
        %870 = vmatmul.f32.gmra.mxu0 %v812
        %v871 = vpop.f32.mrf.mxu0
        %v872 = vadd.f32 %v843, %v871
        %873 = vmatmul.f32.gmra.mxu0 %v814
        %v874 = vpop.f32.mrf.mxu0
        %v875 = vadd.f32 %v846, %v874
        %876 = vmatmul.f32.gmra.mxu0 %v816
        %v877 = vpop.f32.mrf.mxu0
        %v878 = vadd.f32 %v849, %v877
        %879 = vdwg.mxu0
        %v880 = vxor.u32 %v869, 2147483648
        %v881 = vxor.u32 %v872, 2147483648
        %v882 = vxor.u32 %v875, 2147483648
        %v883 = vxor.u32 %v878, 2147483648
        %v884 = vmul.f32 %v880, 1.442695
        %v885 = vpow.pop %v884
        %v886 = vmul.f32 %v881, 1.442695
        %v887 = vpow.pop %v886
        %v888 = vmul.f32 %v882, 1.442695
        %v889 = vpow.pop %v888
        %v890 = vmul.f32 %v883, 1.442695
        %v891 = vpow.pop %v890
        %v892 = vadd.f32 %v885, 1.0
        %v893 = vadd.f32 %v887, 1.0
        %v894 = vadd.f32 %v889, 1.0
        %v895 = vadd.f32 %v891, 1.0
        %v896 = vrcp.pop %v892
        %v897 = vmul.f32 %v892, %v896
        %v898 = vsub.f32 1.0, %v897
        %v899 = vmul.f32 %v896, %v898
        %v900 = vadd.f32 %v896, %v899
        %vm901 = vweird.f32 %v892
        %vm902 = vweird.f32 %v896
        %vm903 = vmor %vm901, %vm902
        %v904 = vsel %vm903, %v896, %v900
        %v905 = vand.u32 2147483647, %v892
        %vm906 = vcmp.eq.f32.partialorder %v905, 8.507059e+37
        %v907 = vand.u32 %v892, 2147483648
        %v908 = vor.u32 1.1754944e-38, %v907
        %v909 = vsel %vm906, %v908, %v904
        %v910 = vmul.f32 1.0, %v909
        %v911 = vrcp.pop %v893
        %v912 = vmul.f32 %v893, %v911
        %v913 = vsub.f32 1.0, %v912
        %v914 = vmul.f32 %v911, %v913
        %v915 = vadd.f32 %v911, %v914
        %vm916 = vweird.f32 %v893
        %vm917 = vweird.f32 %v911
        %vm918 = vmor %vm916, %vm917
        %v919 = vsel %vm918, %v911, %v915
        %v920 = vand.u32 2147483647, %v893
        %vm921 = vcmp.eq.f32.partialorder %v920, 8.507059e+37
        %v922 = vand.u32 %v893, 2147483648
        %v923 = vor.u32 1.1754944e-38, %v922
        %v924 = vsel %vm921, %v923, %v919
        %v925 = vmul.f32 1.0, %v924
        %v926 = vrcp.pop %v894
        %v927 = vmul.f32 %v894, %v926
        %v928 = vsub.f32 1.0, %v927
        %v929 = vmul.f32 %v926, %v928
        %v930 = vadd.f32 %v926, %v929
        %vm931 = vweird.f32 %v894
        %vm932 = vweird.f32 %v926
        %vm933 = vmor %vm931, %vm932
        %v934 = vsel %vm933, %v926, %v930
        %v935 = vand.u32 2147483647, %v894
        %vm936 = vcmp.eq.f32.partialorder %v935, 8.507059e+37
        %v937 = vand.u32 %v894, 2147483648
        %v938 = vor.u32 1.1754944e-38, %v937
        %v939 = vsel %vm936, %v938, %v934
        %v940 = vmul.f32 1.0, %v939
        %v941 = vrcp.pop %v895
        %v942 = vmul.f32 %v895, %v941
        %v943 = vsub.f32 1.0, %v942
        %v944 = vmul.f32 %v941, %v943
        %v945 = vadd.f32 %v941, %v944
        %vm946 = vweird.f32 %v895
        %vm947 = vweird.f32 %v941
        %vm948 = vmor %vm946, %vm947
        %v949 = vsel %vm948, %v941, %v945
        %v950 = vand.u32 2147483647, %v895
        %vm951 = vcmp.eq.f32.partialorder %v950, 8.507059e+37
        %v952 = vand.u32 %v895, 2147483648
        %v953 = vor.u32 1.1754944e-38, %v952
        %v954 = vsel %vm951, %v953, %v949
        %v955 = vmul.f32 1.0, %v954
        %v956 = vld [vmem:[%s4] sm:$0xff]
        %v957 = vld [vmem:[%s4 + $0x8] sm:$0xff]
        %v958 = vld [vmem:[%s4 + $0x10] sm:$0xff]
        %v959 = vld [vmem:[%s4 + $0x18] sm:$0xff]
        %v960 = vld [vmem:[%s4 + $0x20] sm:$0xff]
        %v961 = vld [vmem:[%s4 + $0x28] sm:$0xff]
        %v962 = vld [vmem:[%s4 + $0x30] sm:$0xff]
        %v963 = vld [vmem:[%s4 + $0x38] sm:$0xff]
        %v964 = vld [vmem:[%s4 + $0x40] sm:$0xff]
        %v965 = vld [vmem:[%s4 + $0x48] sm:$0xff]
        %v966 = vld [vmem:[%s4 + $0x50] sm:$0xff]
        %v967 = vld [vmem:[%s4 + $0x58] sm:$0xff]
        %v968 = vld [vmem:[%s4 + $0x60] sm:$0xff]
        %v969 = vld [vmem:[%s4 + $0x68] sm:$0xff]
        %v970 = vld [vmem:[%s4 + $0x70] sm:$0xff]
        %v971 = vld [vmem:[%s4 + $0x78] sm:$0xff]
        %v972 = vld [vmem:[%s4 + $0x80] sm:$0xff]
        %v973 = vld [vmem:[%s4 + $0x88] sm:$0xff]
        %v974 = vld [vmem:[%s4 + $0x90] sm:$0xff]
        %v975 = vld [vmem:[%s4 + $0x98] sm:$0xff]
        %v976 = vld [vmem:[%s4 + $0xa0] sm:$0xff]
        %v977 = vld [vmem:[%s4 + $0xa8] sm:$0x3]
        %v978 = vld [vmem:[%s7] sm:$0x1]
        %v980 = vperm.slane %v978, 0
        %v983 = vsel %vm818, %v977, 0
        %985 = vmatpush.msra.mxu0 %v971
        %986 = vmatpush.msra.mxu0 %v970
        %987 = vmatpush.msra.mxu0 %v969
        %988 = vmatpush.msra.mxu0 %v968
        %989 = vmatpush.msra.mxu0 %v967
        %990 = vmatpush.msra.mxu0 %v966
        %991 = vmatpush.msra.mxu0 %v965
        %992 = vmatpush.msra.mxu0 %v964
        %993 = vmatpush.msra.mxu0 %v963
        %994 = vmatpush.msra.mxu0 %v962
        %995 = vmatpush.msra.mxu0 %v961
        %996 = vmatpush.msra.mxu0 %v960
        %997 = vmatpush.msra.mxu0 %v959
        %998 = vmatpush.msra.mxu0 %v958
        %999 = vmatpush.msra.mxu0 %v957
        %1000 = vmatpush.msra.mxu0 %v956
        %1001 = vmatmul.f32.gmra.mxu0 %v779
        %v1002 = vpop.f32.mrf.mxu0
        %v1003 = vadd.f32 %v980, %v1002
        %1004 = vmatmul.f32.gmra.mxu0 %v780
        %v1005 = vpop.f32.mrf.mxu0
        %v1006 = vadd.f32 %v980, %v1005
        %1007 = vmatmul.f32.gmra.mxu0 %v781
        %v1008 = vpop.f32.mrf.mxu0
        %v1009 = vadd.f32 %v980, %v1008
        %1010 = vmatmul.f32.gmra.mxu0 %v782
        %v1011 = vpop.f32.mrf.mxu0
        %v1012 = vadd.f32 %v980, %v1011
        %1013 = vdwg.mxu0
        %1014 = vmatpush.msra.mxu0 0.0
        %1015 = vmatpush.msra.mxu0 0.0
        %1016 = vmatpush.msra.mxu0 0.0
        %1017 = vmatpush.msra.mxu0 0.0
        %1018 = vmatpush.msra.mxu0 0.0
        %1019 = vmatpush.msra.mxu0 0.0
        %1020 = vmatpush.msra.mxu0 0.0
        %1021 = vmatpush.msra.mxu0 0.0
        %1022 = vmatpush.msra.mxu0 0.0
        %1023 = vmatpush.msra.mxu0 0.0
        %1024 = vmatpush.msra.mxu0 %v983
        %1025 = vmatpush.msra.mxu0 %v976
        %1026 = vmatpush.msra.mxu0 %v975
        %1027 = vmatpush.msra.mxu0 %v974
        %1028 = vmatpush.msra.mxu0 %v973
        %1029 = vmatpush.msra.mxu0 %v972
        %1030 = vmatmul.f32.gmra.mxu0 %v810
        %v1031 = vpop.f32.mrf.mxu0
        %v1032 = vadd.f32 %v1003, %v1031
        %1033 = vmatmul.f32.gmra.mxu0 %v812
        %v1034 = vpop.f32.mrf.mxu0
        %v1035 = vadd.f32 %v1006, %v1034
        %1036 = vmatmul.f32.gmra.mxu0 %v814
        %v1037 = vpop.f32.mrf.mxu0
        %v1038 = vadd.f32 %v1009, %v1037
        %1039 = vmatmul.f32.gmra.mxu0 %v816
        %v1040 = vpop.f32.mrf.mxu0
        %v1041 = vadd.f32 %v1012, %v1040
        %1042 = vdwg.mxu0
        %v1043 = vxor.u32 %v1032, 2147483648
        %v1044 = vxor.u32 %v1035, 2147483648
        %v1045 = vxor.u32 %v1038, 2147483648
        %v1046 = vxor.u32 %v1041, 2147483648
        %v1047 = vmul.f32 %v1043, 1.442695
        %v1048 = vpow.pop %v1047
        %v1049 = vmul.f32 %v1044, 1.442695
        %v1050 = vpow.pop %v1049
        %v1051 = vmul.f32 %v1045, 1.442695
        %v1052 = vpow.pop %v1051
        %v1053 = vmul.f32 %v1046, 1.442695
        %v1054 = vpow.pop %v1053
        %v1055 = vadd.f32 %v1048, 1.0
        %v1056 = vadd.f32 %v1050, 1.0
        %v1057 = vadd.f32 %v1052, 1.0
        %v1058 = vadd.f32 %v1054, 1.0
        %v1059 = vrcp.pop %v1055
        %v1060 = vmul.f32 %v1055, %v1059
        %v1061 = vsub.f32 1.0, %v1060
        %v1062 = vmul.f32 %v1059, %v1061
        %v1063 = vadd.f32 %v1059, %v1062
        %vm1064 = vweird.f32 %v1055
        %vm1065 = vweird.f32 %v1059
        %vm1066 = vmor %vm1064, %vm1065
        %v1067 = vsel %vm1066, %v1059, %v1063
        %v1068 = vand.u32 2147483647, %v1055
        %vm1069 = vcmp.eq.f32.partialorder %v1068, 8.507059e+37
        %v1070 = vand.u32 %v1055, 2147483648
        %v1071 = vor.u32 1.1754944e-38, %v1070
        %v1072 = vsel %vm1069, %v1071, %v1067
        %v1073 = vmul.f32 1.0, %v1072
        %v1074 = vrcp.pop %v1056
        %v1075 = vmul.f32 %v1056, %v1074
        %v1076 = vsub.f32 1.0, %v1075
        %v1077 = vmul.f32 %v1074, %v1076
        %v1078 = vadd.f32 %v1074, %v1077
        %vm1079 = vweird.f32 %v1056
        %vm1080 = vweird.f32 %v1074
        %vm1081 = vmor %vm1079, %vm1080
        %v1082 = vsel %vm1081, %v1074, %v1078
        %v1083 = vand.u32 2147483647, %v1056
        %vm1084 = vcmp.eq.f32.partialorder %v1083, 8.507059e+37
        %v1085 = vand.u32 %v1056, 2147483648
        %v1086 = vor.u32 1.1754944e-38, %v1085
        %v1087 = vsel %vm1084, %v1086, %v1082
        %v1088 = vmul.f32 1.0, %v1087
        %v1089 = vrcp.pop %v1057
        %v1090 = vmul.f32 %v1057, %v1089
        %v1091 = vsub.f32 1.0, %v1090
        %v1092 = vmul.f32 %v1089, %v1091
        %v1093 = vadd.f32 %v1089, %v1092
        %vm1094 = vweird.f32 %v1057
        %vm1095 = vweird.f32 %v1089
        %vm1096 = vmor %vm1094, %vm1095
        %v1097 = vsel %vm1096, %v1089, %v1093
        %v1098 = vand.u32 2147483647, %v1057
        %vm1099 = vcmp.eq.f32.partialorder %v1098, 8.507059e+37
        %v1100 = vand.u32 %v1057, 2147483648
        %v1101 = vor.u32 1.1754944e-38, %v1100
        %v1102 = vsel %vm1099, %v1101, %v1097
        %v1103 = vmul.f32 1.0, %v1102
        %v1104 = vrcp.pop %v1058
        %v1105 = vmul.f32 %v1058, %v1104
        %v1106 = vsub.f32 1.0, %v1105
        %v1107 = vmul.f32 %v1104, %v1106
        %v1108 = vadd.f32 %v1104, %v1107
        %vm1109 = vweird.f32 %v1058
        %vm1110 = vweird.f32 %v1104
        %vm1111 = vmor %vm1109, %vm1110
        %v1112 = vsel %vm1111, %v1104, %v1108
        %v1113 = vand.u32 2147483647, %v1058
        %vm1114 = vcmp.eq.f32.partialorder %v1113, 8.507059e+37
        %v1115 = vand.u32 %v1058, 2147483648
        %v1116 = vor.u32 1.1754944e-38, %v1115
        %v1117 = vsel %vm1114, %v1116, %v1112
        %v1118 = vmul.f32 1.0, %v1117
        %v1119 = vmul.f32 %v910, %v366
        %v1120 = vmul.f32 %v925, %v367
        %v1121 = vmul.f32 %v940, %v368
        %v1122 = vmul.f32 %v955, %v369
        %1125 = vrot.lane.b32.xlu0 %v1121, 32
        %v1126 = vpop.permute.xlu0 %1125
        %1127 = vrot.lane.b32.xlu0 %v1122, 32
        %v1128 = vpop.permute.xlu0 %1127
        %v1131 = vsel %vm393, %v1119, %v1126
        %v1132 = vsel %vm393, %v1120, %v1128
        %1133 = vmatpush.msra.mxu0 0.0
        %1134 = vmatpush.msra.mxu0 0.0
        %1135 = vmatpush.msra.mxu0 0.0
        %1136 = vmatpush.msra.mxu0 0.0
        %1137 = vmatpush.msra.mxu0 0.0
        %1138 = vmatpush.msra.mxu0 0.0
        %1139 = vmatpush.msra.mxu0 0.0
        %1140 = vmatpush.msra.mxu0 0.0
        %1141 = vmatpush.msra.mxu0 0.0
        %1142 = vmatpush.msra.mxu0 0.0
        %1143 = vmatpush.msra.mxu0 0.0
        %1144 = vmatpush.msra.mxu0 0.0
        %1145 = vmatpush.msra.mxu0 0.0
        %1146 = vmatpush.msra.mxu0 0.0
        %1147 = vmatpush.msra.mxu0 %v1132
        %1148 = vmatpush.msra.mxu0 %v1131
        %1149 = vmatmul.f32.gmra.mxu0 %v398
        %v1150 = vpop.f32.mrf.mxu0
        %v1151 = vadd.f32 0.0, %v1150
        %1152 = vmatmul.f32.gmra.mxu0 %v401
        %v1153 = vpop.f32.mrf.mxu0
        %v1154 = vadd.f32 0.0, %v1153
        %1155 = vdwg.mxu0
        %1156 = vmatpush.msra.mxu0 0.0
        %1157 = vmatpush.msra.mxu0 0.0
        %1158 = vmatpush.msra.mxu0 0.0
        %1159 = vmatpush.msra.mxu0 0.0
        %1160 = vmatpush.msra.mxu0 0.0
        %1161 = vmatpush.msra.mxu0 0.0
        %1162 = vmatpush.msra.mxu0 0.0
        %1163 = vmatpush.msra.mxu0 0.0
        %1164 = vmatpush.msra.mxu0 0.0
        %1165 = vmatpush.msra.mxu0 0.0
        %1166 = vmatpush.msra.mxu0 0.0
        %1167 = vmatpush.msra.mxu0 0.0
        %1168 = vmatpush.msra.mxu0 0.0
        %1169 = vmatpush.msra.mxu0 0.0
        %1170 = vmatpush.msra.mxu0 %v1154
        %1171 = vmatpush.msra.mxu0 %v1151
        %1172 = vmatmul.f32.gmra.mxu0 %v398
        %v1173 = vpop.f32.mrf.mxu0
        %v1174 = vadd.f32 0.0, %v1173
        %1175 = vmatmul.f32.gmra.mxu0 %v401
        %v1176 = vpop.f32.mrf.mxu0
        %v1177 = vadd.f32 0.0, %v1176
        %1178 = vdwg.mxu0
        %v1179 = vmul.f32 %v1174, 2.0
        %v1180 = vmul.f32 %v1177, 2.0
        %v1181 = vsub.f32 %v1179, %v1131
        %v1182 = vsub.f32 %v1180, %v1132
        %1183 = vmatpush.msra.mxu0 0.0
        %1184 = vmatpush.msra.mxu0 0.0
        %1185 = vmatpush.msra.mxu0 0.0
        %1186 = vmatpush.msra.mxu0 0.0
        %1187 = vmatpush.msra.mxu0 0.0
        %1188 = vmatpush.msra.mxu0 0.0
        %1189 = vmatpush.msra.mxu0 0.0
        %1190 = vmatpush.msra.mxu0 0.0
        %1191 = vmatpush.msra.mxu0 0.0
        %1192 = vmatpush.msra.mxu0 0.0
        %1193 = vmatpush.msra.mxu0 0.0
        %1194 = vmatpush.msra.mxu0 0.0
        %1195 = vmatpush.msra.mxu0 0.0
        %1196 = vmatpush.msra.mxu0 0.0
        %1197 = vmatpush.msra.mxu0 %v1154
        %1198 = vmatpush.msra.mxu0 %v1151
        %1199 = vmatmul.f32.gmra.mxu0 %v454
        %v1200 = vpop.f32.mrf.mxu0
        %v1201 = vadd.f32 0.0, %v1200
        %1202 = vmatmul.f32.gmra.mxu0 %v457
        %v1203 = vpop.f32.mrf.mxu0
        %v1204 = vadd.f32 0.0, %v1203
        %1205 = vdwg.mxu0
        %1206 = vmatpush.msra.mxu0 0.0
        %1207 = vmatpush.msra.mxu0 0.0
        %1208 = vmatpush.msra.mxu0 0.0
        %1209 = vmatpush.msra.mxu0 0.0
        %1210 = vmatpush.msra.mxu0 0.0
        %1211 = vmatpush.msra.mxu0 0.0
        %1212 = vmatpush.msra.mxu0 0.0
        %1213 = vmatpush.msra.mxu0 0.0
        %1214 = vmatpush.msra.mxu0 0.0
        %1215 = vmatpush.msra.mxu0 0.0
        %1216 = vmatpush.msra.mxu0 0.0
        %1217 = vmatpush.msra.mxu0 0.0
        %1218 = vmatpush.msra.mxu0 0.0
        %1219 = vmatpush.msra.mxu0 0.0
        %1220 = vmatpush.msra.mxu0 %v1204
        %1221 = vmatpush.msra.mxu0 %v1201
        %1222 = vmatmul.f32.gmra.mxu0 %v454
        %v1223 = vpop.f32.mrf.mxu0
        %v1224 = vadd.f32 0.0, %v1223
        %1225 = vmatmul.f32.gmra.mxu0 %v457
        %v1226 = vpop.f32.mrf.mxu0
        %v1227 = vadd.f32 0.0, %v1226
        %1228 = vdwg.mxu0
        %v1229 = vmul.f32 %v1224, 2.0
        %v1230 = vmul.f32 %v1227, 2.0
        %v1231 = vsub.f32 %v1229, %v1151
        %v1232 = vsub.f32 %v1230, %v1154
        %1235 = vrot.lane.b32.xlu0 %v1151, 32
        %v1236 = vpop.permute.xlu0 %1235
        %1237 = vrot.lane.b32.xlu0 %v1154, 32
        %v1238 = vpop.permute.xlu0 %1237
        %1243 = vrot.lane.b32.xlu0 %v1181, 64
        %v1244 = vpop.permute.xlu0 %1243
        %1245 = vrot.lane.b32.xlu0 %v1182, 64
        %v1246 = vpop.permute.xlu0 %1245
        %1251 = vrot.lane.b32.xlu0 %v1201, 96
        %v1252 = vpop.permute.xlu0 %1251
        %1253 = vrot.lane.b32.xlu0 %v1204, 96
        %v1254 = vpop.permute.xlu0 %1253
        %v1257 = vsel %vm393, %v1131, %v1236
        %v1258 = vsel %vm393, %v1132, %v1238
        %v1259 = vsel %vm712, %v1257, %v1244
        %v1260 = vsel %vm712, %v1258, %v1246
        %v1261 = vsel %vm715, %v1259, %v1252
        %v1262 = vsel %vm715, %v1260, %v1254
        %1265 = vrot.lane.b32.xlu0 %v1131, 96
        %v1266 = vpop.permute.xlu0 %1265
        %1267 = vrot.lane.b32.xlu0 %v1132, 96
        %v1268 = vpop.permute.xlu0 %1267
        %1271 = vrot.lane.b32.xlu0 %v1181, 32
        %v1272 = vpop.permute.xlu0 %1271
        %1273 = vrot.lane.b32.xlu0 %v1182, 32
        %v1274 = vpop.permute.xlu0 %1273
        %1277 = vrot.lane.b32.xlu0 %v1201, 64
        %v1278 = vpop.permute.xlu0 %1277
        %1279 = vrot.lane.b32.xlu0 %v1204, 64
        %v1280 = vpop.permute.xlu0 %1279
        %1285 = vrot.lane.b32.xlu0 %v1231, 96
        %v1286 = vpop.permute.xlu0 %1285
        %1287 = vrot.lane.b32.xlu0 %v1232, 96
        %v1288 = vpop.permute.xlu0 %1287
        %v1289 = vsel %vm393, %v1266, %v1151
        %v1290 = vsel %vm393, %v1268, %v1154
        %v1291 = vsel %vm712, %v1289, %v1272
        %v1292 = vsel %vm712, %v1290, %v1274
        %v1293 = vsel %vm715, %v1291, %v1278
        %v1294 = vsel %vm715, %v1292, %v1280
        %1299 = vrot.lane.b32.xlu0 %v1261, 10
        %v1300 = vpop.permute.xlu0 %1299
        %1301 = vrot.lane.b32.xlu0 %v1231, 10
        %v1302 = vpop.permute.xlu0 %1301
        %1303 = vrot.lane.b32.xlu0 %v1262, 10
        %v1304 = vpop.permute.xlu0 %1303
        %1305 = vrot.lane.b32.xlu0 %v1232, 10
        %v1306 = vpop.permute.xlu0 %1305
        %1307 = vrot.lane.b32.xlu0 %v1293, 10
        %v1308 = vpop.permute.xlu0 %1307
        %1309 = vrot.lane.b32.xlu0 %v1286, 10
        %v1310 = vpop.permute.xlu0 %1309
        %1311 = vrot.lane.b32.xlu0 %v1294, 10
        %v1312 = vpop.permute.xlu0 %1311
        %1313 = vrot.lane.b32.xlu0 %v1288, 10
        %v1314 = vpop.permute.xlu0 %1313
        %v1315 = vsel %vm770, %v1300, %v1302
        %v1316 = vsel %vm770, %v1304, %v1306
        %v1317 = vsel %vm770, %v1308, %v1310
        %v1318 = vsel %vm770, %v1312, %v1314
        %v1323 = vsel %vm770, %v550, %v1300
        %v1324 = vsel %vm770, %v551, %v1304
        %v1325 = vsel %vm770, %v584, %v1308
        %v1326 = vsel %vm770, %v585, %v1312
        %v1327 = vld [vmem:[%s5] sm:$0xff]
        %v1328 = vld [vmem:[%s5 + $0x8] sm:$0xff]
        %v1329 = vld [vmem:[%s5 + $0x10] sm:$0xff]
        %v1330 = vld [vmem:[%s5 + $0x18] sm:$0xff]
        %v1331 = vld [vmem:[%s5 + $0x20] sm:$0xff]
        %v1332 = vld [vmem:[%s5 + $0x28] sm:$0xff]
        %v1333 = vld [vmem:[%s5 + $0x30] sm:$0xff]
        %v1334 = vld [vmem:[%s5 + $0x38] sm:$0xff]
        %v1335 = vld [vmem:[%s5 + $0x40] sm:$0xff]
        %v1336 = vld [vmem:[%s5 + $0x48] sm:$0xff]
        %v1337 = vld [vmem:[%s5 + $0x50] sm:$0xff]
        %v1338 = vld [vmem:[%s5 + $0x58] sm:$0xff]
        %v1339 = vld [vmem:[%s5 + $0x60] sm:$0xff]
        %v1340 = vld [vmem:[%s5 + $0x68] sm:$0xff]
        %v1341 = vld [vmem:[%s5 + $0x70] sm:$0xff]
        %v1342 = vld [vmem:[%s5 + $0x78] sm:$0xff]
        %v1343 = vld [vmem:[%s5 + $0x80] sm:$0xff]
        %v1344 = vld [vmem:[%s5 + $0x88] sm:$0xff]
        %v1345 = vld [vmem:[%s5 + $0x90] sm:$0xff]
        %v1346 = vld [vmem:[%s5 + $0x98] sm:$0xff]
        %v1347 = vld [vmem:[%s5 + $0xa0] sm:$0xff]
        %v1348 = vld [vmem:[%s5 + $0xa8] sm:$0x3]
        %v1349 = vld [vmem:[%s8] sm:$0x1]
        %v1351 = vperm.slane %v1349, 0
        %v1353 = vsel %vm809, %v1315, 0
        %v1355 = vsel %vm809, %v1316, 0
        %v1357 = vsel %vm809, %v1317, 0
        %v1359 = vsel %vm809, %v1318, 0
        %v1362 = vsel %vm818, %v1348, 0
        %1364 = vmatpush.msra.mxu0 %v1342
        %1365 = vmatpush.msra.mxu0 %v1341
        %1366 = vmatpush.msra.mxu0 %v1340
        %1367 = vmatpush.msra.mxu0 %v1339
        %1368 = vmatpush.msra.mxu0 %v1338
        %1369 = vmatpush.msra.mxu0 %v1337
        %1370 = vmatpush.msra.mxu0 %v1336
        %1371 = vmatpush.msra.mxu0 %v1335
        %1372 = vmatpush.msra.mxu0 %v1334
        %1373 = vmatpush.msra.mxu0 %v1333
        %1374 = vmatpush.msra.mxu0 %v1332
        %1375 = vmatpush.msra.mxu0 %v1331
        %1376 = vmatpush.msra.mxu0 %v1330
        %1377 = vmatpush.msra.mxu0 %v1329
        %1378 = vmatpush.msra.mxu0 %v1328
        %1379 = vmatpush.msra.mxu0 %v1327
        %1380 = vmatmul.f32.gmra.mxu0 %v1323
        %v1381 = vpop.f32.mrf.mxu0
        %v1382 = vadd.f32 %v1351, %v1381
        %1383 = vmatmul.f32.gmra.mxu0 %v1324
        %v1384 = vpop.f32.mrf.mxu0
        %v1385 = vadd.f32 %v1351, %v1384
        %1386 = vmatmul.f32.gmra.mxu0 %v1325
        %v1387 = vpop.f32.mrf.mxu0
        %v1388 = vadd.f32 %v1351, %v1387
        %1389 = vmatmul.f32.gmra.mxu0 %v1326
        %v1390 = vpop.f32.mrf.mxu0
        %v1391 = vadd.f32 %v1351, %v1390
        %1392 = vdwg.mxu0
        %1393 = vmatpush.msra.mxu0 0.0
        %1394 = vmatpush.msra.mxu0 0.0
        %1395 = vmatpush.msra.mxu0 0.0
        %1396 = vmatpush.msra.mxu0 0.0
        %1397 = vmatpush.msra.mxu0 0.0
        %1398 = vmatpush.msra.mxu0 0.0
        %1399 = vmatpush.msra.mxu0 0.0
        %1400 = vmatpush.msra.mxu0 0.0
        %1401 = vmatpush.msra.mxu0 0.0
        %1402 = vmatpush.msra.mxu0 0.0
        %1403 = vmatpush.msra.mxu0 %v1362
        %1404 = vmatpush.msra.mxu0 %v1347
        %1405 = vmatpush.msra.mxu0 %v1346
        %1406 = vmatpush.msra.mxu0 %v1345
        %1407 = vmatpush.msra.mxu0 %v1344
        %1408 = vmatpush.msra.mxu0 %v1343
        %1409 = vmatmul.f32.gmra.mxu0 %v1353
        %v1410 = vpop.f32.mrf.mxu0
        %v1411 = vadd.f32 %v1382, %v1410
        %1412 = vmatmul.f32.gmra.mxu0 %v1355
        %v1413 = vpop.f32.mrf.mxu0
        %v1414 = vadd.f32 %v1385, %v1413
        %1415 = vmatmul.f32.gmra.mxu0 %v1357
        %v1416 = vpop.f32.mrf.mxu0
        %v1417 = vadd.f32 %v1388, %v1416
        %1418 = vmatmul.f32.gmra.mxu0 %v1359
        %v1419 = vpop.f32.mrf.mxu0
        %v1420 = vadd.f32 %v1391, %v1419
        %1421 = vdwg.mxu0
        %v1422 = vtanh.pop %v1411
        %v1423 = vtanh.pop %v1414
        %v1424 = vtanh.pop %v1417
        %v1425 = vtanh.pop %v1420
        %v1426 = vmul.f32 %v1073, %v366
        %v1427 = vmul.f32 %v1088, %v367
        %v1428 = vmul.f32 %v1103, %v368
        %v1429 = vmul.f32 %v1118, %v369
        %v1430 = vsub.f32 1.0, %v1073
        %v1431 = vsub.f32 1.0, %v1088
        %v1432 = vsub.f32 1.0, %v1103
        %v1433 = vsub.f32 1.0, %v1118
        %v1434 = vmul.f32 %v1430, %v1422
        %v1435 = vmul.f32 %v1431, %v1423
        %v1436 = vmul.f32 %v1432, %v1424
        %v1437 = vmul.f32 %v1433, %v1425
        %v1438 = vadd.f32 %v1426, %v1434
        %v1439 = vadd.f32 %v1427, %v1435
        %v1440 = vadd.f32 %v1428, %v1436
        %v1441 = vadd.f32 %v1429, %v1437
        %1442 = vst.msk [vmem:[%s346] sm:$0xff] %vm393, %v1438
        %1443 = vst.msk [vmem:[%s346 + $0x8] sm:$0xff] %vm393, %v1439
        %1444 = vst.msk [vmem:[%s346 + $0x10] sm:$0xff] %vm393, %v1440
        %1445 = vst.msk [vmem:[%s346 + $0x18] sm:$0xff] %vm393, %v1441
        %s1446 = sand.u32 %s230, 1
        %s1447 = scalar_lea.sflag [#allocation3], %s1446
        %s1448 = sand.u32 %s230, 1
        %s1449 = smul.addr %s1448, 32
        %s1450 = scalar_lea.vmem [#allocation2], %s1449
        // Predicated region
        $region57: #{tpu_custom_call.1} parent=55 // pred_check
          %p1451 = pneg %p240
        $region58: #{tpu_custom_call.1} parent=55 // pred_check_branch
          %1453 = sbr.rel (%p1451) target = $region60
        $region59: #{tpu_custom_call.1} parent=55 // pred_region
          %s1454 = smul.u32 2, %s23
          %1456 = vsyncadd %s1447, 0
          %s1457 = smul.addr %s1454, 2
          %s1458 = smul.addr %s1457, 8
          %s1459 = scalar_lea.hbm %s9, %s1458
          %s1460 = sshll.u32 %s1450, 4
          %s1461 = int_to_ptr.vmem [resolvable:$true] %s1460
          %s1462 = sshll.u32 %s1459, 4
          %s1463 = int_to_ptr.hbm [resolvable:$true] %s1462
          %1468 = dma.vmem_to_hbm [thread:$0]  %s1461, 512, %s1463, %s1447, 128, 128, 8
        $region60: #{tpu_custom_call.1} parent=55 // pred_fallthru
          _
      $region56: #{tpu_custom_call.1} parent=5 // pred_fallthru
        _
      %p1469 = scmp.le.s32.totalorder 2, %s18
      // Predicated region
      $region61: #{tpu_custom_call.1} parent=5 // pred_check
        %p1470 = pneg %p1469
      $region62: #{tpu_custom_call.1} parent=5 // pred_check_branch
        %1472 = sbr.rel (%p1470) target = $region64
      $region63: #{tpu_custom_call.1} parent=5 // pred_region
        %s1473 = ssub.s32 %s18, 2
        // Predicated region
        $region65: #{tpu_custom_call.1} parent=63 // pred_check
          %p1474 = pneg %p246
        $region66: #{tpu_custom_call.1} parent=63 // pred_check_branch
          %1476 = sbr.rel (%p1474) target = $region68
        $region67: #{tpu_custom_call.1} parent=63 // pred_region
          %s1477 = sand.u32 %s231, 1
          %s1478 = scalar_lea.sflag [#allocation3], %s1477
          %s1479 = sand.u32 %s231, 1
          %s1480 = smul.addr %s1479, 32
          %s1481 = scalar_lea.vmem [#allocation2], %s1480
          %1483 = dma.done %s1478, 512
        $region68: #{tpu_custom_call.1} parent=63 // pred_fallthru
          _
      $region64: #{tpu_custom_call.1} parent=5 // pred_fallthru
        _
    $region6: #{tpu_custom_call.1} parent=1 // loop_footer
      %s22 = sadd.s32 1, %s18
    $region7: #{tpu_custom_call.1} parent=1 // loop_footer_branch
      %17 = sbr.rel target = $region3
    $region8: #{tpu_custom_call.1} parent=1 // loop_exit
      _
    %1484 = vsyncpa [#allocation3], 1
    %s1485 = scalar_lea.sflag [#allocation3], 1
    %1486 = vsyncpa %s1485, 1

</llo_original>
